<compile_context>
chip_gen: v7x
topology: tpu7x:2x2x1
jax: 0.10.0
libtpu: 0.0.40
codegen_flags: <defaults>
</compile_context>

<pallas_src>
import functools

import jax
import jax.numpy as jnp
from jax.experimental import pallas as pl
from jax.experimental.pallas import tpu as pltpu


def _upsample_kernel(x_ref, e_ref, w_ref, b_ref, o_ref):
    # x_ref: (Cin, th, W)        input rows for one batch element / row tile
    # e_ref: (W, k*k*W)          0/1 expansion matrix, E[j, m] = ((m % (W*k))//k == j)
    # w_ref: (Cout*Cin, k*k*W)   periodic weight rows,
    #                            w_ref[co*Cin+ci, m] = weight[ci, co, m // (W*k), m % k]
    # b_ref: (Cout, k*k*W)       bias rows, b_ref[co, m] = bias[co]
    # o_ref: (Cout, th, k*k*W)   final NCHW bytes (minor dim = (ki, j, kj) flattened)
    cin = x_ref.shape[0]
    cout = o_ref.shape[0]
    e = e_ref[...]

    # Lane upsample / kj-interleave on the MXU (idle otherwise).  E is 0/1 with
    # exactly one nonzero per column, so this is an (exact) copy into the wide,
    # already-interleaved column layout.
    x_wide = [
        jnp.dot(x_ref[ci], e, preferred_element_type=jnp.float32)
        for ci in range(cin)
    ]

    # Tiny 3-deep contraction as VPU broadcast-FMAs against periodic lane
    # patterns; each store is a full, contiguous (th, k*k*W) row slab so the
    # HBM bytes land directly in NCHW order.
    for co in range(cout):
        acc = x_wide[0] * w_ref[co * cin:co * cin + 1, :]
        for ci in range(1, cin):
            acc = acc + x_wide[ci] * w_ref[co * cin + ci:co * cin + ci + 1, :]
        acc = acc + b_ref[co:co + 1, :]
        o_ref[co, :, :] = acc.astype(o_ref.dtype)


def _pick_row_tile(h, out_bytes_per_row):
    """Largest row tile that divides H exactly and keeps blocks modest."""
    target_bytes = 2 * 1024 * 1024          # per output buffer (double-buffered)
    max_rows = max(1, target_bytes // max(1, out_bytes_per_row))
    if max_rows >= h:
        return h                            # full image: no tail, fewest steps
    best = None
    d = 8                                   # keep the sublane dim 8-aligned
    while d <= max_rows:
        if h % d == 0:
            best = d
        d += 8
    return best if best is not None else h


@functools.partial(jax.jit, static_argnames=("stride",))
def conv_transpose_upsample(x, weight, bias, stride):
    """ConvTranspose2d with kernel_size == stride == `stride`, padding 0.

    x:      (N, Cin, H, W)      float32, NCHW (PyTorch convention)
    weight: (Cin, Cout, k, k)   float32 (PyTorch ConvTranspose2d layout)
    bias:   (Cout,)             float32
    returns (N, Cout, H*k, W*k) float32
    """
    n, cin, h, w = x.shape
    cin_w, cout, kh, kw = weight.shape
    assert cin_w == cin and kh == stride and kw == stride
    k = stride
    wk = w * k                   # interleaved columns per ki
    m = k * wk                   # output minor dim: (ki, j, kj) flattened

    # 0/1 expansion matrix: x_wide[i, mm] = x[i, (mm % wk) // k].
    mm = jnp.arange(m)
    e = (((mm % wk) // k)[None, :] == jnp.arange(w)[:, None]).astype(jnp.float32)

    # Periodic weight rows: w_rows[co*Cin+ci, mm] = weight[ci, co, mm//wk, mm%k].
    wtile = jnp.tile(weight, (1, 1, 1, w))                     # (Cin, Cout, k, wk)
    w_rows = jnp.transpose(wtile, (1, 0, 2, 3)).reshape(cout * cin, m)
    b_rows = jnp.broadcast_to(bias[:, None], (cout, m)).astype(jnp.float32)

    # TODO(synk): for very wide images (W >~ 1024) the (W, k*k*W) expansion
    # matrix and full-width row blocks get large; add column tiling then.
    th = _pick_row_tile(h, cout * m * 4)
    grid = (n, h // th)

    flops = 2 * n * cin * h * w * m + 2 * n * cout * cin * h * m
    bytes_accessed = 4 * (n * cin * h * w + n * cout * h * m
                          + w * m + cout * cin * m + cout * m)

    out4 = pl.pallas_call(
        _upsample_kernel,
        out_shape=jax.ShapeDtypeStruct((n, cout, h, m), x.dtype),
        grid_spec=pltpu.PrefetchScalarGridSpec(
            num_scalar_prefetch=0,
            grid=grid,
            in_specs=[
                pl.BlockSpec((None, cin, th, w), lambda b, r: (b, 0, r, 0)),
                pl.BlockSpec((w, m), lambda b, r: (0, 0)),
                pl.BlockSpec((cout * cin, m), lambda b, r: (0, 0)),
                pl.BlockSpec((cout, m), lambda b, r: (0, 0)),
            ],
            out_specs=pl.BlockSpec((None, cout, th, m),
                                   lambda b, r: (b, 0, r, 0)),
        ),
        compiler_params=pltpu.CompilerParams(
            # TODO(synk): on v7x, pltpu.CORE_PARALLEL on the batch axis would
            # guarantee both TensorCores get grid steps.
            dimension_semantics=("parallel", "parallel")),
        cost_estimate=pl.CostEstimate(
            flops=int(flops), transcendentals=0,
            bytes_accessed=int(bytes_accessed)),
    )(x, e, w_rows, b_rows)

    # (N, Cout, H, k*k*W) has exactly the NCHW byte order -> free reshape.
    return out4.reshape(n, cout, h * k, w * k)


def reference_conv_transpose(x, weight, bias, stride):
    # out[n,co,i*k+ki,j*k+kj] = sum_ci x[n,ci,i,j]*W[ci,co,ki,kj] + b[co]
    N, Cin, H, W = x.shape
    _, Cout, k, _ = weight.shape
    out = jnp.einsum('ncij,copq->noipjq', x, weight)
    out = out.reshape(N, Cout, H * k, W * k) + bias[None, :, None, None]
    return out


if __name__ == "__main__":
    # up_sampling(from_sz=16, to_sz=32)  ->  filter_size = stride = 2
    from_sz, to_sz = 16, 32
    k = to_sz // from_sz
    Cin = Cout = 3           # fixed at 3 by the module
    N = 2

    key = jax.random.PRNGKey(0)
    kx, kw, kb = jax.random.split(key, 3)

    x = jax.random.normal(kx, (N, Cin, from_sz, from_sz), dtype=jnp.float32)

    # Deterministic parameter init (PyTorch-style uniform bound 1/sqrt(fan))
    fan = Cin * k * k
    bound = 1.0 / (fan ** 0.5)
    weight = jax.random.uniform(kw, (Cin, Cout, k, k), dtype=jnp.float32,
                                minval=-bound, maxval=bound)
    bias = jax.random.uniform(kb, (Cout,), dtype=jnp.float32,
                              minval=-bound, maxval=bound)

    out = conv_transpose_upsample(x, weight, bias, stride=k)
    out = jax.block_until_ready(out)

    ref = reference_conv_transpose(x, weight, bias, k)
    assert out.shape == (N, Cout, to_sz, to_sz), out.shape
    assert jnp.allclose(out, ref, atol=1e-5, rtol=1e-5), "mismatch vs reference"

    print("KERNEL_OK")
</pallas_src>

<mosaic_0001>
module attributes {stable_mosaic.version = 11 : i64} {
  func.func @_upsample_kernel(%arg0: i32, %arg1: i32, %arg2: memref<1x3x16x16xf32, #tpu.memory_space<vmem>>, %arg3: memref<16x64xf32, #tpu.memory_space<vmem>>, %arg4: memref<9x64xf32, #tpu.memory_space<vmem>>, %arg5: memref<3x64xf32, #tpu.memory_space<vmem>>, %arg6: memref<1x3x16x64xf32, #tpu.memory_space<vmem>>) attributes {dimension_semantics = [#tpu.dimension_semantics<parallel>, #tpu.dimension_semantics<parallel>], iteration_bounds = array<i64: 2, 1>, scalar_prefetch = 0 : i64, scratch_operands = 0 : i64, tpu.core_type = #tpu.core_type<tc>, window_params = [{transform_indices = @transform_0, window_bounds = array<i64: 1, 3, 16, 16>}, {pipeline_mode = #tpu.pipeline_mode<synchronous>, transform_indices = @transform_1, window_bounds = array<i64: 16, 64>}, {pipeline_mode = #tpu.pipeline_mode<synchronous>, transform_indices = @transform_2, window_bounds = array<i64: 9, 64>}, {pipeline_mode = #tpu.pipeline_mode<synchronous>, transform_indices = @transform_3, window_bounds = array<i64: 3, 64>}, {transform_indices = @transform_4, window_bounds = array<i64: 1, 3, 16, 64>}]} {
    %c0 = arith.constant 0 : index
    %c0_0 = arith.constant 0 : index
    %0 = vector.load %arg3[%c0, %c0_0] : memref<16x64xf32, #tpu.memory_space<vmem>>, vector<16x64xf32>
    %c0_1 = arith.constant 0 : index
    %c0_2 = arith.constant 0 : index
    %c0_3 = arith.constant 0 : index
    %c0_4 = arith.constant 0 : index
    %1 = vector.load %arg2[%c0_1, %c0_2, %c0_3, %c0_4] : memref<1x3x16x16xf32, #tpu.memory_space<vmem>>, vector<1x1x16x16xf32>
    %2 = vector.shape_cast %1 : vector<1x1x16x16xf32> to vector<16x16xf32>
    %cst = arith.constant dense<0.000000e+00> : vector<16x64xf32>
    %3 = tpu.matmul %2, %0, %cst {dimension_numbers = #tpu.dot_dimension_numbers<[1], [0], [0], [1], [0, 0, 1, 1], [], []>} : vector<16x16xf32>, vector<16x64xf32>, vector<16x64xf32> -> vector<16x64xf32>
    %c0_5 = arith.constant 0 : index
    %c1 = arith.constant 1 : index
    %c0_6 = arith.constant 0 : index
    %c0_7 = arith.constant 0 : index
    %4 = vector.load %arg2[%c0_5, %c1, %c0_6, %c0_7] : memref<1x3x16x16xf32, #tpu.memory_space<vmem>>, vector<1x1x16x16xf32>
    %5 = vector.shape_cast %4 : vector<1x1x16x16xf32> to vector<16x16xf32>
    %cst_8 = arith.constant dense<0.000000e+00> : vector<16x64xf32>
    %6 = tpu.matmul %5, %0, %cst_8 {dimension_numbers = #tpu.dot_dimension_numbers<[1], [0], [0], [1], [0, 0, 1, 1], [], []>} : vector<16x16xf32>, vector<16x64xf32>, vector<16x64xf32> -> vector<16x64xf32>
    %c0_9 = arith.constant 0 : index
    %c2 = arith.constant 2 : index
    %c0_10 = arith.constant 0 : index
    %c0_11 = arith.constant 0 : index
    %7 = vector.load %arg2[%c0_9, %c2, %c0_10, %c0_11] : memref<1x3x16x16xf32, #tpu.memory_space<vmem>>, vector<1x1x16x16xf32>
    %8 = vector.shape_cast %7 : vector<1x1x16x16xf32> to vector<16x16xf32>
    %cst_12 = arith.constant dense<0.000000e+00> : vector<16x64xf32>
    %9 = tpu.matmul %8, %0, %cst_12 {dimension_numbers = #tpu.dot_dimension_numbers<[1], [0], [0], [1], [0, 0, 1, 1], [], []>} : vector<16x16xf32>, vector<16x64xf32>, vector<16x64xf32> -> vector<16x64xf32>
    %c0_13 = arith.constant 0 : index
    %c0_14 = arith.constant 0 : index
    %10 = vector.load %arg4[%c0_13, %c0_14] : memref<9x64xf32, #tpu.memory_space<vmem>>, vector<1x64xf32>
    %11 = vector.broadcast %10 : vector<1x64xf32> to vector<16x64xf32>
    %12 = arith.mulf %3, %11 : vector<16x64xf32>
    %c1_15 = arith.constant 1 : index
    %c0_16 = arith.constant 0 : index
    %13 = vector.load %arg4[%c1_15, %c0_16] : memref<9x64xf32, #tpu.memory_space<vmem>>, vector<1x64xf32>
    %14 = vector.broadcast %13 : vector<1x64xf32> to vector<16x64xf32>
    %15 = arith.mulf %6, %14 : vector<16x64xf32>
    %16 = arith.addf %12, %15 : vector<16x64xf32>
    %c2_17 = arith.constant 2 : index
    %c0_18 = arith.constant 0 : index
    %17 = vector.load %arg4[%c2_17, %c0_18] : memref<9x64xf32, #tpu.memory_space<vmem>>, vector<1x64xf32>
    %18 = vector.broadcast %17 : vector<1x64xf32> to vector<16x64xf32>
    %19 = arith.mulf %9, %18 : vector<16x64xf32>
    %20 = arith.addf %16, %19 : vector<16x64xf32>
    %c0_19 = arith.constant 0 : index
    %c0_20 = arith.constant 0 : index
    %21 = vector.load %arg5[%c0_19, %c0_20] : memref<3x64xf32, #tpu.memory_space<vmem>>, vector<1x64xf32>
    %22 = vector.broadcast %21 : vector<1x64xf32> to vector<16x64xf32>
    %23 = arith.addf %20, %22 : vector<16x64xf32>
    %c0_21 = arith.constant 0 : index
    %c0_22 = arith.constant 0 : index
    %c0_23 = arith.constant 0 : index
    %c0_24 = arith.constant 0 : index
    %24 = vector.load %arg6[%c0_21, %c0_22, %c0_23, %c0_24] : memref<1x3x16x64xf32, #tpu.memory_space<vmem>>, vector<1x1x16x64xf32>
    %25 = vector.shape_cast %24 : vector<1x1x16x64xf32> to vector<16x64xf32>
    %26 = vector.shape_cast %23 : vector<16x64xf32> to vector<1x1x16x64xf32>
    tpu.vector_store %arg6[%c0_21, %c0_22, %c0_23, %c0_24], %26 {strides = array<i32>} : memref<1x3x16x64xf32, #tpu.memory_space<vmem>>, vector<1x1x16x64xf32>,
    %c3 = arith.constant 3 : index
    %c0_25 = arith.constant 0 : index
    %27 = vector.load %arg4[%c3, %c0_25] : memref<9x64xf32, #tpu.memory_space<vmem>>, vector<1x64xf32>
    %28 = vector.broadcast %27 : vector<1x64xf32> to vector<16x64xf32>
    %29 = arith.mulf %3, %28 : vector<16x64xf32>
    %c4 = arith.constant 4 : index
    %c0_26 = arith.constant 0 : index
    %30 = vector.load %arg4[%c4, %c0_26] : memref<9x64xf32, #tpu.memory_space<vmem>>, vector<1x64xf32>
    %31 = vector.broadcast %30 : vector<1x64xf32> to vector<16x64xf32>
    %32 = arith.mulf %6, %31 : vector<16x64xf32>
    %33 = arith.addf %29, %32 : vector<16x64xf32>
    %c5 = arith.constant 5 : index
    %c0_27 = arith.constant 0 : index
    %34 = vector.load %arg4[%c5, %c0_27] : memref<9x64xf32, #tpu.memory_space<vmem>>, vector<1x64xf32>
    %35 = vector.broadcast %34 : vector<1x64xf32> to vector<16x64xf32>
    %36 = arith.mulf %9, %35 : vector<16x64xf32>
    %37 = arith.addf %33, %36 : vector<16x64xf32>
    %c1_28 = arith.constant 1 : index
    %c0_29 = arith.constant 0 : index
    %38 = vector.load %arg5[%c1_28, %c0_29] : memref<3x64xf32, #tpu.memory_space<vmem>>, vector<1x64xf32>
    %39 = vector.broadcast %38 : vector<1x64xf32> to vector<16x64xf32>
    %40 = arith.addf %37, %39 : vector<16x64xf32>
    %c0_30 = arith.constant 0 : index
    %c1_31 = arith.constant 1 : index
    %c0_32 = arith.constant 0 : index
    %c0_33 = arith.constant 0 : index
    %41 = vector.load %arg6[%c0_30, %c1_31, %c0_32, %c0_33] : memref<1x3x16x64xf32, #tpu.memory_space<vmem>>, vector<1x1x16x64xf32>
    %42 = vector.shape_cast %41 : vector<1x1x16x64xf32> to vector<16x64xf32>
    %43 = vector.shape_cast %40 : vector<16x64xf32> to vector<1x1x16x64xf32>
    tpu.vector_store %arg6[%c0_30, %c1_31, %c0_32, %c0_33], %43 {strides = array<i32>} : memref<1x3x16x64xf32, #tpu.memory_space<vmem>>, vector<1x1x16x64xf32>,
    %c6 = arith.constant 6 : index
    %c0_34 = arith.constant 0 : index
    %44 = vector.load %arg4[%c6, %c0_34] : memref<9x64xf32, #tpu.memory_space<vmem>>, vector<1x64xf32>
    %45 = vector.broadcast %44 : vector<1x64xf32> to vector<16x64xf32>
    %46 = arith.mulf %3, %45 : vector<16x64xf32>
    %c7 = arith.constant 7 : index
    %c0_35 = arith.constant 0 : index
    %47 = vector.load %arg4[%c7, %c0_35] : memref<9x64xf32, #tpu.memory_space<vmem>>, vector<1x64xf32>
    %48 = vector.broadcast %47 : vector<1x64xf32> to vector<16x64xf32>
    %49 = arith.mulf %6, %48 : vector<16x64xf32>
    %50 = arith.addf %46, %49 : vector<16x64xf32>
    %c8 = arith.constant 8 : index
    %c0_36 = arith.constant 0 : index
    %51 = vector.load %arg4[%c8, %c0_36] : memref<9x64xf32, #tpu.memory_space<vmem>>, vector<1x64xf32>
    %52 = vector.broadcast %51 : vector<1x64xf32> to vector<16x64xf32>
    %53 = arith.mulf %9, %52 : vector<16x64xf32>
    %54 = arith.addf %50, %53 : vector<16x64xf32>
    %c2_37 = arith.constant 2 : index
    %c0_38 = arith.constant 0 : index
    %55 = vector.load %arg5[%c2_37, %c0_38] : memref<3x64xf32, #tpu.memory_space<vmem>>, vector<1x64xf32>
    %56 = vector.broadcast %55 : vector<1x64xf32> to vector<16x64xf32>
    %57 = arith.addf %54, %56 : vector<16x64xf32>
    %c0_39 = arith.constant 0 : index
    %c2_40 = arith.constant 2 : index
    %c0_41 = arith.constant 0 : index
    %c0_42 = arith.constant 0 : index
    %58 = vector.load %arg6[%c0_39, %c2_40, %c0_41, %c0_42] : memref<1x3x16x64xf32, #tpu.memory_space<vmem>>, vector<1x1x16x64xf32>
    %59 = vector.shape_cast %58 : vector<1x1x16x64xf32> to vector<16x64xf32>
    %60 = vector.shape_cast %57 : vector<16x64xf32> to vector<1x1x16x64xf32>
    tpu.vector_store %arg6[%c0_39, %c2_40, %c0_41, %c0_42], %60 {strides = array<i32>} : memref<1x3x16x64xf32, #tpu.memory_space<vmem>>, vector<1x1x16x64xf32>,
    return
  }
  func.func @transform_0(%arg0: i32, %arg1: i32) -> (i32, i32, i32, i32) {
    %c0_i32 = arith.constant 0 : i32
    %c0_i32_0 = arith.constant 0 : i32
    %c0_i32_1 = arith.constant 0 : i32
    return %arg0, %c0_i32, %arg1, %c0_i32_0 : i32, i32, i32, i32
  }
  func.func @transform_1(%arg0: i32, %arg1: i32) -> (i32, i32) {
    %c0_i32 = arith.constant 0 : i32
    %c0_i32_0 = arith.constant 0 : i32
    %c0_i32_1 = arith.constant 0 : i32
    return %c0_i32, %c0_i32_0 : i32, i32
  }
  func.func @transform_2(%arg0: i32, %arg1: i32) -> (i32, i32) {
    %c0_i32 = arith.constant 0 : i32
    %c0_i32_0 = arith.constant 0 : i32
    %c0_i32_1 = arith.constant 0 : i32
    return %c0_i32, %c0_i32_0 : i32, i32
  }
  func.func @transform_3(%arg0: i32, %arg1: i32) -> (i32, i32) {
    %c0_i32 = arith.constant 0 : i32
    %c0_i32_0 = arith.constant 0 : i32
    %c0_i32_1 = arith.constant 0 : i32
    return %c0_i32, %c0_i32_0 : i32, i32
  }
  func.func @transform_4(%arg0: i32, %arg1: i32) -> (i32, i32, i32, i32) {
    %c0_i32 = arith.constant 0 : i32
    %c0_i32_0 = arith.constant 0 : i32
    %c0_i32_1 = arith.constant 0 : i32
    return %arg0, %c0_i32, %arg1, %c0_i32_0 : i32, i32, i32, i32
  }
}

</mosaic_0001>

<llo_original>
// kernel: tile.9
$region0: #{tile.9}
  %s0 = inlined_call_operand.vmem [shape: f32[3,3,2,16,2], index: 0, kind: input, shape index: {}]
  %s1 = inlined_call_operand.vmem [shape: f32[3,3,2,32], index: 1, kind: output, shape index: {}]
  $region1: #{tile.9} parent=0
    #allocation0 [shape = 'u8[36864]{0}', space=vmem, size = 0x9000, scoped, tag = 'scoped mem for output reshape']
    %s2 = smov 3
    %v3 = vld [vmem:[%s0] ss:$16 sm:%s2]
    %s4 = smov 12
    %v5 = vld [vmem:[%s0] ss:$16 sm:%s4]
    %vm6 = vcmask 1043458
    %v7 = vsel %vm6, %v5, %v3
    %s8 = smov 48
    %v9 = vld [vmem:[%s0] ss:$16 sm:%s8]
    %vm10 = vcmask 1045508
    %v11 = vsel %vm10, %v9, %v7
    %s12 = smov 192
    %v13 = vld [vmem:[%s0] ss:$16 sm:%s12]
    %vm14 = vcmask 1047558
    %v15 = vsel %vm14, %v13, %v11
    %vm16 = vcmask 15360
    %17 = vst.msk [vmem:[#allocation0] sm:$0x3] %vm16, %v15
    %s18 = scalar_lea.vmem [#allocation0], 6
    %19 = vst.msk [vmem:[%s18] sm:$0xc] %vm16, %v15
    %s20 = scalar_lea.vmem [#allocation0], 12
    %21 = vst.msk [vmem:[%s20] sm:$0x30] %vm16, %v15
    %s22 = scalar_lea.vmem [#allocation0], 18
    %23 = vst.msk [vmem:[%s22] sm:$0xc0] %vm16, %v15
    %s24 = scalar_lea.vmem %s0, 128
    %s25 = smov 3
    %v26 = vld [vmem:[%s24] ss:$16 sm:%s25]
    %s27 = scalar_lea.vmem %s0, 128
    %s28 = smov 12
    %v29 = vld [vmem:[%s27] ss:$16 sm:%s28]
    %vm30 = vcmask 1043458
    %v31 = vsel %vm30, %v29, %v26
    %s32 = scalar_lea.vmem %s0, 128
    %s33 = smov 48
    %v34 = vld [vmem:[%s32] ss:$16 sm:%s33]
    %vm35 = vcmask 1045508
    %v36 = vsel %vm35, %v34, %v31
    %s37 = scalar_lea.vmem %s0, 128
    %s38 = smov 192
    %v39 = vld [vmem:[%s37] ss:$16 sm:%s38]
    %vm40 = vcmask 1047558
    %v41 = vsel %vm40, %v39, %v36
    %vm42 = vcmask 15360
    %s43 = scalar_lea.vmem [#allocation0], 32
    %44 = vst.msk [vmem:[%s43] sm:$0x3] %vm42, %v41
    %s45 = scalar_lea.vmem [#allocation0], 38
    %46 = vst.msk [vmem:[%s45] sm:$0xc] %vm42, %v41
    %s47 = scalar_lea.vmem [#allocation0], 44
    %48 = vst.msk [vmem:[%s47] sm:$0x30] %vm42, %v41
    %s49 = scalar_lea.vmem [#allocation0], 50
    %50 = vst.msk [vmem:[%s49] sm:$0xc0] %vm42, %v41
    %s51 = scalar_lea.vmem %s0, 256
    %s52 = smov 3
    %v53 = vld [vmem:[%s51] ss:$16 sm:%s52]
    %vm54 = vcmask 15360
    %s55 = scalar_lea.vmem [#allocation0], 64
    %56 = vst.msk [vmem:[%s55] sm:$0x3] %vm54, %v53
    %s57 = scalar_lea.vmem %s0, 15
    %s58 = smov 3
    %v59 = vld [vmem:[%s57] ss:$16 sm:%s58]
    %s60 = scalar_lea.vmem %s0, 15
    %s61 = smov 12
    %v62 = vld [vmem:[%s60] ss:$16 sm:%s61]
    %vm63 = vcmask 1043458
    %v64 = vsel %vm63, %v62, %v59
    %s65 = scalar_lea.vmem %s0, 15
    %s66 = smov 48
    %v67 = vld [vmem:[%s65] ss:$16 sm:%s66]
    %vm68 = vcmask 1045508
    %v69 = vsel %vm68, %v67, %v64
    %s70 = scalar_lea.vmem %s0, 15
    %s71 = smov 192
    %v72 = vld [vmem:[%s70] ss:$16 sm:%s71]
    %vm73 = vcmask 1047558
    %v74 = vsel %vm73, %v72, %v69
    %75 = vrot.lane.b32.xlu0 %v74, 30
    %v76 = vpop.permute.xlu0 %75
    %vm77 = vcmask 261360
    %78 = vst.msk [vmem:[#allocation0] sm:$0x3] %vm77, %v76
    %s79 = scalar_lea.vmem [#allocation0], 6
    %80 = vst.msk [vmem:[%s79] sm:$0xc] %vm77, %v76
    %s81 = scalar_lea.vmem [#allocation0], 12
    %82 = vst.msk [vmem:[%s81] sm:$0x30] %vm77, %v76
    %s83 = scalar_lea.vmem [#allocation0], 18
    %84 = vst.msk [vmem:[%s83] sm:$0xc0] %vm77, %v76
    %s85 = scalar_lea.vmem %s0, 143
    %s86 = smov 3
    %v87 = vld [vmem:[%s85] ss:$16 sm:%s86]
    %s88 = scalar_lea.vmem %s0, 143
    %s89 = smov 12
    %v90 = vld [vmem:[%s88] ss:$16 sm:%s89]
    %vm91 = vcmask 1043458
    %v92 = vsel %vm91, %v90, %v87
    %s93 = scalar_lea.vmem %s0, 143
    %s94 = smov 48
    %v95 = vld [vmem:[%s93] ss:$16 sm:%s94]
    %vm96 = vcmask 1045508
    %v97 = vsel %vm96, %v95, %v92
    %s98 = scalar_lea.vmem %s0, 143
    %s99 = smov 192
    %v100 = vld [vmem:[%s98] ss:$16 sm:%s99]
    %vm101 = vcmask 1047558
    %v102 = vsel %vm101, %v100, %v97
    %103 = vrot.lane.b32.xlu0 %v102, 30
    %v104 = vpop.permute.xlu0 %103
    %vm105 = vcmask 261360
    %s106 = scalar_lea.vmem [#allocation0], 32
    %107 = vst.msk [vmem:[%s106] sm:$0x3] %vm105, %v104
    %s108 = scalar_lea.vmem [#allocation0], 38
    %109 = vst.msk [vmem:[%s108] sm:$0xc] %vm105, %v104
    %s110 = scalar_lea.vmem [#allocation0], 44
    %111 = vst.msk [vmem:[%s110] sm:$0x30] %vm105, %v104
    %s112 = scalar_lea.vmem [#allocation0], 50
    %113 = vst.msk [vmem:[%s112] sm:$0xc0] %vm105, %v104
    %s114 = scalar_lea.vmem %s0, 271
    %s115 = smov 3
    %v116 = vld [vmem:[%s114] ss:$16 sm:%s115]
    %117 = vrot.lane.b32.xlu0 %v116, 30
    %v118 = vpop.permute.xlu0 %117
    %vm119 = vcmask 261360
    %s120 = scalar_lea.vmem [#allocation0], 64
    %121 = vst.msk [vmem:[%s120] sm:$0x3] %vm119, %v118
    %s122 = scalar_lea.vmem %s0, 14
    %s123 = smov 3
    %v124 = vld [vmem:[%s122] ss:$16 sm:%s123]
    %s125 = scalar_lea.vmem %s0, 14
    %s126 = smov 12
    %v127 = vld [vmem:[%s125] ss:$16 sm:%s126]
    %vm128 = vcmask 1043458
    %v129 = vsel %vm128, %v127, %v124
    %s130 = scalar_lea.vmem %s0, 14
    %s131 = smov 48
    %v132 = vld [vmem:[%s130] ss:$16 sm:%s131]
    %vm133 = vcmask 1045508
    %v134 = vsel %vm133, %v132, %v129
    %s135 = scalar_lea.vmem %s0, 14
    %s136 = smov 192
    %v137 = vld [vmem:[%s135] ss:$16 sm:%s136]
    %vm138 = vcmask 1047558
    %v139 = vsel %vm138, %v137, %v134
    %140 = vrot.lane.b32.xlu0 %v139, 28
    %v141 = vpop.permute.xlu0 %140
    %vm142 = vcmask 244960
    %143 = vst.msk [vmem:[#allocation0] sm:$0x3] %vm142, %v141
    %s144 = scalar_lea.vmem [#allocation0], 6
    %145 = vst.msk [vmem:[%s144] sm:$0xc] %vm142, %v141
    %s146 = scalar_lea.vmem [#allocation0], 12
    %147 = vst.msk [vmem:[%s146] sm:$0x30] %vm142, %v141
    %s148 = scalar_lea.vmem [#allocation0], 18
    %149 = vst.msk [vmem:[%s148] sm:$0xc0] %vm142, %v141
    %s150 = scalar_lea.vmem %s0, 142
    %s151 = smov 3
    %v152 = vld [vmem:[%s150] ss:$16 sm:%s151]
    %s153 = scalar_lea.vmem %s0, 142
    %s154 = smov 12
    %v155 = vld [vmem:[%s153] ss:$16 sm:%s154]
    %vm156 = vcmask 1043458
    %v157 = vsel %vm156, %v155, %v152
    %s158 = scalar_lea.vmem %s0, 142
    %s159 = smov 48
    %v160 = vld [vmem:[%s158] ss:$16 sm:%s159]
    %vm161 = vcmask 1045508
    %v162 = vsel %vm161, %v160, %v157
    %s163 = scalar_lea.vmem %s0, 142
    %s164 = smov 192
    %v165 = vld [vmem:[%s163] ss:$16 sm:%s164]
    %vm166 = vcmask 1047558
    %v167 = vsel %vm166, %v165, %v162
    %168 = vrot.lane.b32.xlu0 %v167, 28
    %v169 = vpop.permute.xlu0 %168
    %vm170 = vcmask 244960
    %s171 = scalar_lea.vmem [#allocation0], 32
    %172 = vst.msk [vmem:[%s171] sm:$0x3] %vm170, %v169
    %s173 = scalar_lea.vmem [#allocation0], 38
    %174 = vst.msk [vmem:[%s173] sm:$0xc] %vm170, %v169
    %s175 = scalar_lea.vmem [#allocation0], 44
    %176 = vst.msk [vmem:[%s175] sm:$0x30] %vm170, %v169
    %s177 = scalar_lea.vmem [#allocation0], 50
    %178 = vst.msk [vmem:[%s177] sm:$0xc0] %vm170, %v169
    %s179 = scalar_lea.vmem %s0, 270
    %s180 = smov 3
    %v181 = vld [vmem:[%s179] ss:$16 sm:%s180]
    %182 = vrot.lane.b32.xlu0 %v181, 28
    %v183 = vpop.permute.xlu0 %182
    %vm184 = vcmask 244960
    %s185 = scalar_lea.vmem [#allocation0], 64
    %186 = vst.msk [vmem:[%s185] sm:$0x3] %vm184, %v183
    %s187 = scalar_lea.vmem %s0, 13
    %s188 = smov 3
    %v189 = vld [vmem:[%s187] ss:$16 sm:%s188]
    %s190 = scalar_lea.vmem %s0, 13
    %s191 = smov 12
    %v192 = vld [vmem:[%s190] ss:$16 sm:%s191]
    %vm193 = vcmask 1043458
    %v194 = vsel %vm193, %v192, %v189
    %s195 = scalar_lea.vmem %s0, 13
    %s196 = smov 48
    %v197 = vld [vmem:[%s195] ss:$16 sm:%s196]
    %vm198 = vcmask 1045508
    %v199 = vsel %vm198, %v197, %v194
    %s200 = scalar_lea.vmem %s0, 13
    %s201 = smov 192
    %v202 = vld [vmem:[%s200] ss:$16 sm:%s201]
    %vm203 = vcmask 1047558
    %v204 = vsel %vm203, %v202, %v199
    %205 = vrot.lane.b32.xlu0 %v204, 26
    %v206 = vpop.permute.xlu0 %205
    %vm207 = vcmask 228560
    %208 = vst.msk [vmem:[#allocation0] sm:$0x3] %vm207, %v206
    %s209 = scalar_lea.vmem [#allocation0], 6
    %210 = vst.msk [vmem:[%s209] sm:$0xc] %vm207, %v206
    %s211 = scalar_lea.vmem [#allocation0], 12
    %212 = vst.msk [vmem:[%s211] sm:$0x30] %vm207, %v206
    %s213 = scalar_lea.vmem [#allocation0], 18
    %214 = vst.msk [vmem:[%s213] sm:$0xc0] %vm207, %v206
    %s215 = scalar_lea.vmem %s0, 141
    %s216 = smov 3
    %v217 = vld [vmem:[%s215] ss:$16 sm:%s216]
    %s218 = scalar_lea.vmem %s0, 141
    %s219 = smov 12
    %v220 = vld [vmem:[%s218] ss:$16 sm:%s219]
    %vm221 = vcmask 1043458
    %v222 = vsel %vm221, %v220, %v217
    %s223 = scalar_lea.vmem %s0, 141
    %s224 = smov 48
    %v225 = vld [vmem:[%s223] ss:$16 sm:%s224]
    %vm226 = vcmask 1045508
    %v227 = vsel %vm226, %v225, %v222
    %s228 = scalar_lea.vmem %s0, 141
    %s229 = smov 192
    %v230 = vld [vmem:[%s228] ss:$16 sm:%s229]
    %vm231 = vcmask 1047558
    %v232 = vsel %vm231, %v230, %v227
    %233 = vrot.lane.b32.xlu0 %v232, 26
    %v234 = vpop.permute.xlu0 %233
    %vm235 = vcmask 228560
    %s236 = scalar_lea.vmem [#allocation0], 32
    %237 = vst.msk [vmem:[%s236] sm:$0x3] %vm235, %v234
    %s238 = scalar_lea.vmem [#allocation0], 38
    %239 = vst.msk [vmem:[%s238] sm:$0xc] %vm235, %v234
    %s240 = scalar_lea.vmem [#allocation0], 44
    %241 = vst.msk [vmem:[%s240] sm:$0x30] %vm235, %v234
    %s242 = scalar_lea.vmem [#allocation0], 50
    %243 = vst.msk [vmem:[%s242] sm:$0xc0] %vm235, %v234
    %s244 = scalar_lea.vmem %s0, 269
    %s245 = smov 3
    %v246 = vld [vmem:[%s244] ss:$16 sm:%s245]
    %247 = vrot.lane.b32.xlu0 %v246, 26
    %v248 = vpop.permute.xlu0 %247
    %vm249 = vcmask 228560
    %s250 = scalar_lea.vmem [#allocation0], 64
    %251 = vst.msk [vmem:[%s250] sm:$0x3] %vm249, %v248
    %s252 = scalar_lea.vmem %s0, 12
    %s253 = smov 3
    %v254 = vld [vmem:[%s252] ss:$16 sm:%s253]
    %s255 = scalar_lea.vmem %s0, 12
    %s256 = smov 12
    %v257 = vld [vmem:[%s255] ss:$16 sm:%s256]
    %vm258 = vcmask 1043458
    %v259 = vsel %vm258, %v257, %v254
    %s260 = scalar_lea.vmem %s0, 12
    %s261 = smov 48
    %v262 = vld [vmem:[%s260] ss:$16 sm:%s261]
    %vm263 = vcmask 1045508
    %v264 = vsel %vm263, %v262, %v259
    %s265 = scalar_lea.vmem %s0, 12
    %s266 = smov 192
    %v267 = vld [vmem:[%s265] ss:$16 sm:%s266]
    %vm268 = vcmask 1047558
    %v269 = vsel %vm268, %v267, %v264
    %270 = vrot.lane.b32.xlu0 %v269, 24
    %v271 = vpop.permute.xlu0 %270
    %vm272 = vcmask 212160
    %273 = vst.msk [vmem:[#allocation0] sm:$0x3] %vm272, %v271
    %s274 = scalar_lea.vmem [#allocation0], 6
    %275 = vst.msk [vmem:[%s274] sm:$0xc] %vm272, %v271
    %s276 = scalar_lea.vmem [#allocation0], 12
    %277 = vst.msk [vmem:[%s276] sm:$0x30] %vm272, %v271
    %s278 = scalar_lea.vmem [#allocation0], 18
    %279 = vst.msk [vmem:[%s278] sm:$0xc0] %vm272, %v271
    %s280 = scalar_lea.vmem %s0, 140
    %s281 = smov 3
    %v282 = vld [vmem:[%s280] ss:$16 sm:%s281]
    %s283 = scalar_lea.vmem %s0, 140
    %s284 = smov 12
    %v285 = vld [vmem:[%s283] ss:$16 sm:%s284]
    %vm286 = vcmask 1043458
    %v287 = vsel %vm286, %v285, %v282
    %s288 = scalar_lea.vmem %s0, 140
    %s289 = smov 48
    %v290 = vld [vmem:[%s288] ss:$16 sm:%s289]
    %vm291 = vcmask 1045508
    %v292 = vsel %vm291, %v290, %v287
    %s293 = scalar_lea.vmem %s0, 140
    %s294 = smov 192
    %v295 = vld [vmem:[%s293] ss:$16 sm:%s294]
    %vm296 = vcmask 1047558
    %v297 = vsel %vm296, %v295, %v292
    %298 = vrot.lane.b32.xlu0 %v297, 24
    %v299 = vpop.permute.xlu0 %298
    %vm300 = vcmask 212160
    %s301 = scalar_lea.vmem [#allocation0], 32
    %302 = vst.msk [vmem:[%s301] sm:$0x3] %vm300, %v299
    %s303 = scalar_lea.vmem [#allocation0], 38
    %304 = vst.msk [vmem:[%s303] sm:$0xc] %vm300, %v299
    %s305 = scalar_lea.vmem [#allocation0], 44
    %306 = vst.msk [vmem:[%s305] sm:$0x30] %vm300, %v299
    %s307 = scalar_lea.vmem [#allocation0], 50
    %308 = vst.msk [vmem:[%s307] sm:$0xc0] %vm300, %v299
    %s309 = scalar_lea.vmem %s0, 268
    %s310 = smov 3
    %v311 = vld [vmem:[%s309] ss:$16 sm:%s310]
    %312 = vrot.lane.b32.xlu0 %v311, 24
    %v313 = vpop.permute.xlu0 %312
    %vm314 = vcmask 212160
    %s315 = scalar_lea.vmem [#allocation0], 64
    %316 = vst.msk [vmem:[%s315] sm:$0x3] %vm314, %v313
    %s317 = scalar_lea.vmem %s0, 11
    %s318 = smov 3
    %v319 = vld [vmem:[%s317] ss:$16 sm:%s318]
    %s320 = scalar_lea.vmem %s0, 11
    %s321 = smov 12
    %v322 = vld [vmem:[%s320] ss:$16 sm:%s321]
    %vm323 = vcmask 1043458
    %v324 = vsel %vm323, %v322, %v319
    %s325 = scalar_lea.vmem %s0, 11
    %s326 = smov 48
    %v327 = vld [vmem:[%s325] ss:$16 sm:%s326]
    %vm328 = vcmask 1045508
    %v329 = vsel %vm328, %v327, %v324
    %s330 = scalar_lea.vmem %s0, 11
    %s331 = smov 192
    %v332 = vld [vmem:[%s330] ss:$16 sm:%s331]
    %vm333 = vcmask 1047558
    %v334 = vsel %vm333, %v332, %v329
    %335 = vrot.lane.b32.xlu0 %v334, 22
    %v336 = vpop.permute.xlu0 %335
    %vm337 = vcmask 195760
    %338 = vst.msk [vmem:[#allocation0] sm:$0x3] %vm337, %v336
    %s339 = scalar_lea.vmem [#allocation0], 6
    %340 = vst.msk [vmem:[%s339] sm:$0xc] %vm337, %v336
    %s341 = scalar_lea.vmem [#allocation0], 12
    %342 = vst.msk [vmem:[%s341] sm:$0x30] %vm337, %v336
    %s343 = scalar_lea.vmem [#allocation0], 18
    %344 = vst.msk [vmem:[%s343] sm:$0xc0] %vm337, %v336
    %s345 = scalar_lea.vmem %s0, 139
    %s346 = smov 3
    %v347 = vld [vmem:[%s345] ss:$16 sm:%s346]
    %s348 = scalar_lea.vmem %s0, 139
    %s349 = smov 12
    %v350 = vld [vmem:[%s348] ss:$16 sm:%s349]
    %vm351 = vcmask 1043458
    %v352 = vsel %vm351, %v350, %v347
    %s353 = scalar_lea.vmem %s0, 139
    %s354 = smov 48
    %v355 = vld [vmem:[%s353] ss:$16 sm:%s354]
    %vm356 = vcmask 1045508
    %v357 = vsel %vm356, %v355, %v352
    %s358 = scalar_lea.vmem %s0, 139
    %s359 = smov 192
    %v360 = vld [vmem:[%s358] ss:$16 sm:%s359]
    %vm361 = vcmask 1047558
    %v362 = vsel %vm361, %v360, %v357
    %363 = vrot.lane.b32.xlu0 %v362, 22
    %v364 = vpop.permute.xlu0 %363
    %vm365 = vcmask 195760
    %s366 = scalar_lea.vmem [#allocation0], 32
    %367 = vst.msk [vmem:[%s366] sm:$0x3] %vm365, %v364
    %s368 = scalar_lea.vmem [#allocation0], 38
    %369 = vst.msk [vmem:[%s368] sm:$0xc] %vm365, %v364
    %s370 = scalar_lea.vmem [#allocation0], 44
    %371 = vst.msk [vmem:[%s370] sm:$0x30] %vm365, %v364
    %s372 = scalar_lea.vmem [#allocation0], 50
    %373 = vst.msk [vmem:[%s372] sm:$0xc0] %vm365, %v364
    %s374 = scalar_lea.vmem %s0, 267
    %s375 = smov 3
    %v376 = vld [vmem:[%s374] ss:$16 sm:%s375]
    %377 = vrot.lane.b32.xlu0 %v376, 22
    %v378 = vpop.permute.xlu0 %377
    %vm379 = vcmask 195760
    %s380 = scalar_lea.vmem [#allocation0], 64
    %381 = vst.msk [vmem:[%s380] sm:$0x3] %vm379, %v378
    %s382 = scalar_lea.vmem %s0, 10
    %s383 = smov 3
    %v384 = vld [vmem:[%s382] ss:$16 sm:%s383]
    %s385 = scalar_lea.vmem %s0, 10
    %s386 = smov 12
    %v387 = vld [vmem:[%s385] ss:$16 sm:%s386]
    %vm388 = vcmask 1043458
    %v389 = vsel %vm388, %v387, %v384
    %s390 = scalar_lea.vmem %s0, 10
    %s391 = smov 48
    %v392 = vld [vmem:[%s390] ss:$16 sm:%s391]
    %vm393 = vcmask 1045508
    %v394 = vsel %vm393, %v392, %v389
    %s395 = scalar_lea.vmem %s0, 10
    %s396 = smov 192
    %v397 = vld [vmem:[%s395] ss:$16 sm:%s396]
    %vm398 = vcmask 1047558
    %v399 = vsel %vm398, %v397, %v394
    %400 = vrot.lane.b32.xlu0 %v399, 20
    %v401 = vpop.permute.xlu0 %400
    %vm402 = vcmask 179360
    %403 = vst.msk [vmem:[#allocation0] sm:$0x3] %vm402, %v401
    %s404 = scalar_lea.vmem [#allocation0], 6
    %405 = vst.msk [vmem:[%s404] sm:$0xc] %vm402, %v401
    %s406 = scalar_lea.vmem [#allocation0], 12
    %407 = vst.msk [vmem:[%s406] sm:$0x30] %vm402, %v401
    %s408 = scalar_lea.vmem [#allocation0], 18
    %409 = vst.msk [vmem:[%s408] sm:$0xc0] %vm402, %v401
    %s410 = scalar_lea.vmem %s0, 138
    %s411 = smov 3
    %v412 = vld [vmem:[%s410] ss:$16 sm:%s411]
    %s413 = scalar_lea.vmem %s0, 138
    %s414 = smov 12
    %v415 = vld [vmem:[%s413] ss:$16 sm:%s414]
    %vm416 = vcmask 1043458
    %v417 = vsel %vm416, %v415, %v412
    %s418 = scalar_lea.vmem %s0, 138
    %s419 = smov 48
    %v420 = vld [vmem:[%s418] ss:$16 sm:%s419]
    %vm421 = vcmask 1045508
    %v422 = vsel %vm421, %v420, %v417
    %s423 = scalar_lea.vmem %s0, 138
    %s424 = smov 192
    %v425 = vld [vmem:[%s423] ss:$16 sm:%s424]
    %vm426 = vcmask 1047558
    %v427 = vsel %vm426, %v425, %v422
    %428 = vrot.lane.b32.xlu0 %v427, 20
    %v429 = vpop.permute.xlu0 %428
    %vm430 = vcmask 179360
    %s431 = scalar_lea.vmem [#allocation0], 32
    %432 = vst.msk [vmem:[%s431] sm:$0x3] %vm430, %v429
    %s433 = scalar_lea.vmem [#allocation0], 38
    %434 = vst.msk [vmem:[%s433] sm:$0xc] %vm430, %v429
    %s435 = scalar_lea.vmem [#allocation0], 44
    %436 = vst.msk [vmem:[%s435] sm:$0x30] %vm430, %v429
    %s437 = scalar_lea.vmem [#allocation0], 50
    %438 = vst.msk [vmem:[%s437] sm:$0xc0] %vm430, %v429
    %s439 = scalar_lea.vmem %s0, 266
    %s440 = smov 3
    %v441 = vld [vmem:[%s439] ss:$16 sm:%s440]
    %442 = vrot.lane.b32.xlu0 %v441, 20
    %v443 = vpop.permute.xlu0 %442
    %vm444 = vcmask 179360
    %s445 = scalar_lea.vmem [#allocation0], 64
    %446 = vst.msk [vmem:[%s445] sm:$0x3] %vm444, %v443
    %s447 = scalar_lea.vmem %s0, 9
    %s448 = smov 3
    %v449 = vld [vmem:[%s447] ss:$16 sm:%s448]
    %s450 = scalar_lea.vmem %s0, 9
    %s451 = smov 12
    %v452 = vld [vmem:[%s450] ss:$16 sm:%s451]
    %vm453 = vcmask 1043458
    %v454 = vsel %vm453, %v452, %v449
    %s455 = scalar_lea.vmem %s0, 9
    %s456 = smov 48
    %v457 = vld [vmem:[%s455] ss:$16 sm:%s456]
    %vm458 = vcmask 1045508
    %v459 = vsel %vm458, %v457, %v454
    %s460 = scalar_lea.vmem %s0, 9
    %s461 = smov 192
    %v462 = vld [vmem:[%s460] ss:$16 sm:%s461]
    %vm463 = vcmask 1047558
    %v464 = vsel %vm463, %v462, %v459
    %465 = vrot.lane.b32.xlu0 %v464, 18
    %v466 = vpop.permute.xlu0 %465
    %vm467 = vcmask 162960
    %468 = vst.msk [vmem:[#allocation0] sm:$0x3] %vm467, %v466
    %s469 = scalar_lea.vmem [#allocation0], 6
    %470 = vst.msk [vmem:[%s469] sm:$0xc] %vm467, %v466
    %s471 = scalar_lea.vmem [#allocation0], 12
    %472 = vst.msk [vmem:[%s471] sm:$0x30] %vm467, %v466
    %s473 = scalar_lea.vmem [#allocation0], 18
    %474 = vst.msk [vmem:[%s473] sm:$0xc0] %vm467, %v466
    %s475 = scalar_lea.vmem %s0, 137
    %s476 = smov 3
    %v477 = vld [vmem:[%s475] ss:$16 sm:%s476]
    %s478 = scalar_lea.vmem %s0, 137
    %s479 = smov 12
    %v480 = vld [vmem:[%s478] ss:$16 sm:%s479]
    %vm481 = vcmask 1043458
    %v482 = vsel %vm481, %v480, %v477
    %s483 = scalar_lea.vmem %s0, 137
    %s484 = smov 48
    %v485 = vld [vmem:[%s483] ss:$16 sm:%s484]
    %vm486 = vcmask 1045508
    %v487 = vsel %vm486, %v485, %v482
    %s488 = scalar_lea.vmem %s0, 137
    %s489 = smov 192
    %v490 = vld [vmem:[%s488] ss:$16 sm:%s489]
    %vm491 = vcmask 1047558
    %v492 = vsel %vm491, %v490, %v487
    %493 = vrot.lane.b32.xlu0 %v492, 18
    %v494 = vpop.permute.xlu0 %493
    %vm495 = vcmask 162960
    %s496 = scalar_lea.vmem [#allocation0], 32
    %497 = vst.msk [vmem:[%s496] sm:$0x3] %vm495, %v494
    %s498 = scalar_lea.vmem [#allocation0], 38
    %499 = vst.msk [vmem:[%s498] sm:$0xc] %vm495, %v494
    %s500 = scalar_lea.vmem [#allocation0], 44
    %501 = vst.msk [vmem:[%s500] sm:$0x30] %vm495, %v494
    %s502 = scalar_lea.vmem [#allocation0], 50
    %503 = vst.msk [vmem:[%s502] sm:$0xc0] %vm495, %v494
    %s504 = scalar_lea.vmem %s0, 265
    %s505 = smov 3
    %v506 = vld [vmem:[%s504] ss:$16 sm:%s505]
    %507 = vrot.lane.b32.xlu0 %v506, 18
    %v508 = vpop.permute.xlu0 %507
    %vm509 = vcmask 162960
    %s510 = scalar_lea.vmem [#allocation0], 64
    %511 = vst.msk [vmem:[%s510] sm:$0x3] %vm509, %v508
    %s512 = scalar_lea.vmem %s0, 8
    %s513 = smov 3
    %v514 = vld [vmem:[%s512] ss:$16 sm:%s513]
    %s515 = scalar_lea.vmem %s0, 8
    %s516 = smov 12
    %v517 = vld [vmem:[%s515] ss:$16 sm:%s516]
    %vm518 = vcmask 1043458
    %v519 = vsel %vm518, %v517, %v514
    %s520 = scalar_lea.vmem %s0, 8
    %s521 = smov 48
    %v522 = vld [vmem:[%s520] ss:$16 sm:%s521]
    %vm523 = vcmask 1045508
    %v524 = vsel %vm523, %v522, %v519
    %s525 = scalar_lea.vmem %s0, 8
    %s526 = smov 192
    %v527 = vld [vmem:[%s525] ss:$16 sm:%s526]
    %vm528 = vcmask 1047558
    %v529 = vsel %vm528, %v527, %v524
    %530 = vrot.lane.b32.xlu0 %v529, 16
    %v531 = vpop.permute.xlu0 %530
    %vm532 = vcmask 146560
    %533 = vst.msk [vmem:[#allocation0] sm:$0x3] %vm532, %v531
    %s534 = scalar_lea.vmem [#allocation0], 6
    %535 = vst.msk [vmem:[%s534] sm:$0xc] %vm532, %v531
    %s536 = scalar_lea.vmem [#allocation0], 12
    %537 = vst.msk [vmem:[%s536] sm:$0x30] %vm532, %v531
    %s538 = scalar_lea.vmem [#allocation0], 18
    %539 = vst.msk [vmem:[%s538] sm:$0xc0] %vm532, %v531
    %s540 = scalar_lea.vmem %s0, 136
    %s541 = smov 3
    %v542 = vld [vmem:[%s540] ss:$16 sm:%s541]
    %s543 = scalar_lea.vmem %s0, 136
    %s544 = smov 12
    %v545 = vld [vmem:[%s543] ss:$16 sm:%s544]
    %vm546 = vcmask 1043458
    %v547 = vsel %vm546, %v545, %v542
    %s548 = scalar_lea.vmem %s0, 136
    %s549 = smov 48
    %v550 = vld [vmem:[%s548] ss:$16 sm:%s549]
    %vm551 = vcmask 1045508
    %v552 = vsel %vm551, %v550, %v547
    %s553 = scalar_lea.vmem %s0, 136
    %s554 = smov 192
    %v555 = vld [vmem:[%s553] ss:$16 sm:%s554]
    %vm556 = vcmask 1047558
    %v557 = vsel %vm556, %v555, %v552
    %558 = vrot.lane.b32.xlu0 %v557, 16
    %v559 = vpop.permute.xlu0 %558
    %vm560 = vcmask 146560
    %s561 = scalar_lea.vmem [#allocation0], 32
    %562 = vst.msk [vmem:[%s561] sm:$0x3] %vm560, %v559
    %s563 = scalar_lea.vmem [#allocation0], 38
    %564 = vst.msk [vmem:[%s563] sm:$0xc] %vm560, %v559
    %s565 = scalar_lea.vmem [#allocation0], 44
    %566 = vst.msk [vmem:[%s565] sm:$0x30] %vm560, %v559
    %s567 = scalar_lea.vmem [#allocation0], 50
    %568 = vst.msk [vmem:[%s567] sm:$0xc0] %vm560, %v559
    %s569 = scalar_lea.vmem %s0, 264
    %s570 = smov 3
    %v571 = vld [vmem:[%s569] ss:$16 sm:%s570]
    %572 = vrot.lane.b32.xlu0 %v571, 16
    %v573 = vpop.permute.xlu0 %572
    %vm574 = vcmask 146560
    %s575 = scalar_lea.vmem [#allocation0], 64
    %576 = vst.msk [vmem:[%s575] sm:$0x3] %vm574, %v573
    %s577 = scalar_lea.vmem %s0, 7
    %s578 = smov 3
    %v579 = vld [vmem:[%s577] ss:$16 sm:%s578]
    %s580 = scalar_lea.vmem %s0, 7
    %s581 = smov 12
    %v582 = vld [vmem:[%s580] ss:$16 sm:%s581]
    %vm583 = vcmask 1043458
    %v584 = vsel %vm583, %v582, %v579
    %s585 = scalar_lea.vmem %s0, 7
    %s586 = smov 48
    %v587 = vld [vmem:[%s585] ss:$16 sm:%s586]
    %vm588 = vcmask 1045508
    %v589 = vsel %vm588, %v587, %v584
    %s590 = scalar_lea.vmem %s0, 7
    %s591 = smov 192
    %v592 = vld [vmem:[%s590] ss:$16 sm:%s591]
    %vm593 = vcmask 1047558
    %v594 = vsel %vm593, %v592, %v589
    %595 = vrot.lane.b32.xlu0 %v594, 14
    %v596 = vpop.permute.xlu0 %595
    %vm597 = vcmask 130160
    %598 = vst.msk [vmem:[#allocation0] sm:$0x3] %vm597, %v596
    %s599 = scalar_lea.vmem [#allocation0], 6
    %600 = vst.msk [vmem:[%s599] sm:$0xc] %vm597, %v596
    %s601 = scalar_lea.vmem [#allocation0], 12
    %602 = vst.msk [vmem:[%s601] sm:$0x30] %vm597, %v596
    %s603 = scalar_lea.vmem [#allocation0], 18
    %604 = vst.msk [vmem:[%s603] sm:$0xc0] %vm597, %v596
    %s605 = scalar_lea.vmem %s0, 135
    %s606 = smov 3
    %v607 = vld [vmem:[%s605] ss:$16 sm:%s606]
    %s608 = scalar_lea.vmem %s0, 135
    %s609 = smov 12
    %v610 = vld [vmem:[%s608] ss:$16 sm:%s609]
    %vm611 = vcmask 1043458
    %v612 = vsel %vm611, %v610, %v607
    %s613 = scalar_lea.vmem %s0, 135
    %s614 = smov 48
    %v615 = vld [vmem:[%s613] ss:$16 sm:%s614]
    %vm616 = vcmask 1045508
    %v617 = vsel %vm616, %v615, %v612
    %s618 = scalar_lea.vmem %s0, 135
    %s619 = smov 192
    %v620 = vld [vmem:[%s618] ss:$16 sm:%s619]
    %vm621 = vcmask 1047558
    %v622 = vsel %vm621, %v620, %v617
    %623 = vrot.lane.b32.xlu0 %v622, 14
    %v624 = vpop.permute.xlu0 %623
    %vm625 = vcmask 130160
    %s626 = scalar_lea.vmem [#allocation0], 32
    %627 = vst.msk [vmem:[%s626] sm:$0x3] %vm625, %v624
    %s628 = scalar_lea.vmem [#allocation0], 38
    %629 = vst.msk [vmem:[%s628] sm:$0xc] %vm625, %v624
    %s630 = scalar_lea.vmem [#allocation0], 44
    %631 = vst.msk [vmem:[%s630] sm:$0x30] %vm625, %v624
    %s632 = scalar_lea.vmem [#allocation0], 50
    %633 = vst.msk [vmem:[%s632] sm:$0xc0] %vm625, %v624
    %s634 = scalar_lea.vmem %s0, 263
    %s635 = smov 3
    %v636 = vld [vmem:[%s634] ss:$16 sm:%s635]
    %637 = vrot.lane.b32.xlu0 %v636, 14
    %v638 = vpop.permute.xlu0 %637
    %vm639 = vcmask 130160
    %s640 = scalar_lea.vmem [#allocation0], 64
    %641 = vst.msk [vmem:[%s640] sm:$0x3] %vm639, %v638
    %s642 = scalar_lea.vmem %s0, 6
    %s643 = smov 3
    %v644 = vld [vmem:[%s642] ss:$16 sm:%s643]
    %s645 = scalar_lea.vmem %s0, 6
    %s646 = smov 12
    %v647 = vld [vmem:[%s645] ss:$16 sm:%s646]
    %vm648 = vcmask 1043458
    %v649 = vsel %vm648, %v647, %v644
    %s650 = scalar_lea.vmem %s0, 6
    %s651 = smov 48
    %v652 = vld [vmem:[%s650] ss:$16 sm:%s651]
    %vm653 = vcmask 1045508
    %v654 = vsel %vm653, %v652, %v649
    %s655 = scalar_lea.vmem %s0, 6
    %s656 = smov 192
    %v657 = vld [vmem:[%s655] ss:$16 sm:%s656]
    %vm658 = vcmask 1047558
    %v659 = vsel %vm658, %v657, %v654
    %660 = vrot.lane.b32.xlu0 %v659, 12
    %v661 = vpop.permute.xlu0 %660
    %vm662 = vcmask 113760
    %663 = vst.msk [vmem:[#allocation0] sm:$0x3] %vm662, %v661
    %s664 = scalar_lea.vmem [#allocation0], 6
    %665 = vst.msk [vmem:[%s664] sm:$0xc] %vm662, %v661
    %s666 = scalar_lea.vmem [#allocation0], 12
    %667 = vst.msk [vmem:[%s666] sm:$0x30] %vm662, %v661
    %s668 = scalar_lea.vmem [#allocation0], 18
    %669 = vst.msk [vmem:[%s668] sm:$0xc0] %vm662, %v661
    %s670 = scalar_lea.vmem %s0, 134
    %s671 = smov 3
    %v672 = vld [vmem:[%s670] ss:$16 sm:%s671]
    %s673 = scalar_lea.vmem %s0, 134
    %s674 = smov 12
    %v675 = vld [vmem:[%s673] ss:$16 sm:%s674]
    %vm676 = vcmask 1043458
    %v677 = vsel %vm676, %v675, %v672
    %s678 = scalar_lea.vmem %s0, 134
    %s679 = smov 48
    %v680 = vld [vmem:[%s678] ss:$16 sm:%s679]
    %vm681 = vcmask 1045508
    %v682 = vsel %vm681, %v680, %v677
    %s683 = scalar_lea.vmem %s0, 134
    %s684 = smov 192
    %v685 = vld [vmem:[%s683] ss:$16 sm:%s684]
    %vm686 = vcmask 1047558
    %v687 = vsel %vm686, %v685, %v682
    %688 = vrot.lane.b32.xlu0 %v687, 12
    %v689 = vpop.permute.xlu0 %688
    %vm690 = vcmask 113760
    %s691 = scalar_lea.vmem [#allocation0], 32
    %692 = vst.msk [vmem:[%s691] sm:$0x3] %vm690, %v689
    %s693 = scalar_lea.vmem [#allocation0], 38
    %694 = vst.msk [vmem:[%s693] sm:$0xc] %vm690, %v689
    %s695 = scalar_lea.vmem [#allocation0], 44
    %696 = vst.msk [vmem:[%s695] sm:$0x30] %vm690, %v689
    %s697 = scalar_lea.vmem [#allocation0], 50
    %698 = vst.msk [vmem:[%s697] sm:$0xc0] %vm690, %v689
    %s699 = scalar_lea.vmem %s0, 262
    %s700 = smov 3
    %v701 = vld [vmem:[%s699] ss:$16 sm:%s700]
    %702 = vrot.lane.b32.xlu0 %v701, 12
    %v703 = vpop.permute.xlu0 %702
    %vm704 = vcmask 113760
    %s705 = scalar_lea.vmem [#allocation0], 64
    %706 = vst.msk [vmem:[%s705] sm:$0x3] %vm704, %v703
    %s707 = scalar_lea.vmem %s0, 5
    %s708 = smov 3
    %v709 = vld [vmem:[%s707] ss:$16 sm:%s708]
    %s710 = scalar_lea.vmem %s0, 5
    %s711 = smov 12
    %v712 = vld [vmem:[%s710] ss:$16 sm:%s711]
    %vm713 = vcmask 1043458
    %v714 = vsel %vm713, %v712, %v709
    %s715 = scalar_lea.vmem %s0, 5
    %s716 = smov 48
    %v717 = vld [vmem:[%s715] ss:$16 sm:%s716]
    %vm718 = vcmask 1045508
    %v719 = vsel %vm718, %v717, %v714
    %s720 = scalar_lea.vmem %s0, 5
    %s721 = smov 192
    %v722 = vld [vmem:[%s720] ss:$16 sm:%s721]
    %vm723 = vcmask 1047558
    %v724 = vsel %vm723, %v722, %v719
    %725 = vrot.lane.b32.xlu0 %v724, 10
    %v726 = vpop.permute.xlu0 %725
    %vm727 = vcmask 97360
    %728 = vst.msk [vmem:[#allocation0] sm:$0x3] %vm727, %v726
    %s729 = scalar_lea.vmem [#allocation0], 6
    %730 = vst.msk [vmem:[%s729] sm:$0xc] %vm727, %v726
    %s731 = scalar_lea.vmem [#allocation0], 12
    %732 = vst.msk [vmem:[%s731] sm:$0x30] %vm727, %v726
    %s733 = scalar_lea.vmem [#allocation0], 18
    %734 = vst.msk [vmem:[%s733] sm:$0xc0] %vm727, %v726
    %s735 = scalar_lea.vmem %s0, 133
    %s736 = smov 3
    %v737 = vld [vmem:[%s735] ss:$16 sm:%s736]
    %s738 = scalar_lea.vmem %s0, 133
    %s739 = smov 12
    %v740 = vld [vmem:[%s738] ss:$16 sm:%s739]
    %vm741 = vcmask 1043458
    %v742 = vsel %vm741, %v740, %v737
    %s743 = scalar_lea.vmem %s0, 133
    %s744 = smov 48
    %v745 = vld [vmem:[%s743] ss:$16 sm:%s744]
    %vm746 = vcmask 1045508
    %v747 = vsel %vm746, %v745, %v742
    %s748 = scalar_lea.vmem %s0, 133
    %s749 = smov 192
    %v750 = vld [vmem:[%s748] ss:$16 sm:%s749]
    %vm751 = vcmask 1047558
    %v752 = vsel %vm751, %v750, %v747
    %753 = vrot.lane.b32.xlu0 %v752, 10
    %v754 = vpop.permute.xlu0 %753
    %vm755 = vcmask 97360
    %s756 = scalar_lea.vmem [#allocation0], 32
    %757 = vst.msk [vmem:[%s756] sm:$0x3] %vm755, %v754
    %s758 = scalar_lea.vmem [#allocation0], 38
    %759 = vst.msk [vmem:[%s758] sm:$0xc] %vm755, %v754
    %s760 = scalar_lea.vmem [#allocation0], 44
    %761 = vst.msk [vmem:[%s760] sm:$0x30] %vm755, %v754
    %s762 = scalar_lea.vmem [#allocation0], 50
    %763 = vst.msk [vmem:[%s762] sm:$0xc0] %vm755, %v754
    %s764 = scalar_lea.vmem %s0, 261
    %s765 = smov 3
    %v766 = vld [vmem:[%s764] ss:$16 sm:%s765]
    %767 = vrot.lane.b32.xlu0 %v766, 10
    %v768 = vpop.permute.xlu0 %767
    %vm769 = vcmask 97360
    %s770 = scalar_lea.vmem [#allocation0], 64
    %771 = vst.msk [vmem:[%s770] sm:$0x3] %vm769, %v768
    %s772 = scalar_lea.vmem %s0, 4
    %s773 = smov 3
    %v774 = vld [vmem:[%s772] ss:$16 sm:%s773]
    %s775 = scalar_lea.vmem %s0, 4
    %s776 = smov 12
    %v777 = vld [vmem:[%s775] ss:$16 sm:%s776]
    %vm778 = vcmask 1043458
    %v779 = vsel %vm778, %v777, %v774
    %s780 = scalar_lea.vmem %s0, 4
    %s781 = smov 48
    %v782 = vld [vmem:[%s780] ss:$16 sm:%s781]
    %vm783 = vcmask 1045508
    %v784 = vsel %vm783, %v782, %v779
    %s785 = scalar_lea.vmem %s0, 4
    %s786 = smov 192
    %v787 = vld [vmem:[%s785] ss:$16 sm:%s786]
    %vm788 = vcmask 1047558
    %v789 = vsel %vm788, %v787, %v784
    %790 = vrot.lane.b32.xlu0 %v789, 8
    %v791 = vpop.permute.xlu0 %790
    %vm792 = vcmask 80960
    %793 = vst.msk [vmem:[#allocation0] sm:$0x3] %vm792, %v791
    %s794 = scalar_lea.vmem [#allocation0], 6
    %795 = vst.msk [vmem:[%s794] sm:$0xc] %vm792, %v791
    %s796 = scalar_lea.vmem [#allocation0], 12
    %797 = vst.msk [vmem:[%s796] sm:$0x30] %vm792, %v791
    %s798 = scalar_lea.vmem [#allocation0], 18
    %799 = vst.msk [vmem:[%s798] sm:$0xc0] %vm792, %v791
    %s800 = scalar_lea.vmem %s0, 132
    %s801 = smov 3
    %v802 = vld [vmem:[%s800] ss:$16 sm:%s801]
    %s803 = scalar_lea.vmem %s0, 132
    %s804 = smov 12
    %v805 = vld [vmem:[%s803] ss:$16 sm:%s804]
    %vm806 = vcmask 1043458
    %v807 = vsel %vm806, %v805, %v802
    %s808 = scalar_lea.vmem %s0, 132
    %s809 = smov 48
    %v810 = vld [vmem:[%s808] ss:$16 sm:%s809]
    %vm811 = vcmask 1045508
    %v812 = vsel %vm811, %v810, %v807
    %s813 = scalar_lea.vmem %s0, 132
    %s814 = smov 192
    %v815 = vld [vmem:[%s813] ss:$16 sm:%s814]
    %vm816 = vcmask 1047558
    %v817 = vsel %vm816, %v815, %v812
    %818 = vrot.lane.b32.xlu0 %v817, 8
    %v819 = vpop.permute.xlu0 %818
    %vm820 = vcmask 80960
    %s821 = scalar_lea.vmem [#allocation0], 32
    %822 = vst.msk [vmem:[%s821] sm:$0x3] %vm820, %v819
    %s823 = scalar_lea.vmem [#allocation0], 38
    %824 = vst.msk [vmem:[%s823] sm:$0xc] %vm820, %v819
    %s825 = scalar_lea.vmem [#allocation0], 44
    %826 = vst.msk [vmem:[%s825] sm:$0x30] %vm820, %v819
    %s827 = scalar_lea.vmem [#allocation0], 50
    %828 = vst.msk [vmem:[%s827] sm:$0xc0] %vm820, %v819
    %s829 = scalar_lea.vmem %s0, 260
    %s830 = smov 3
    %v831 = vld [vmem:[%s829] ss:$16 sm:%s830]
    %832 = vrot.lane.b32.xlu0 %v831, 8
    %v833 = vpop.permute.xlu0 %832
    %vm834 = vcmask 80960
    %s835 = scalar_lea.vmem [#allocation0], 64
    %836 = vst.msk [vmem:[%s835] sm:$0x3] %vm834, %v833
    %s837 = scalar_lea.vmem %s0, 3
    %s838 = smov 3
    %v839 = vld [vmem:[%s837] ss:$16 sm:%s838]
    %s840 = scalar_lea.vmem %s0, 3
    %s841 = smov 12
    %v842 = vld [vmem:[%s840] ss:$16 sm:%s841]
    %vm843 = vcmask 1043458
    %v844 = vsel %vm843, %v842, %v839
    %s845 = scalar_lea.vmem %s0, 3
    %s846 = smov 48
    %v847 = vld [vmem:[%s845] ss:$16 sm:%s846]
    %vm848 = vcmask 1045508
    %v849 = vsel %vm848, %v847, %v844
    %s850 = scalar_lea.vmem %s0, 3
    %s851 = smov 192
    %v852 = vld [vmem:[%s850] ss:$16 sm:%s851]
    %vm853 = vcmask 1047558
    %v854 = vsel %vm853, %v852, %v849
    %855 = vrot.lane.b32.xlu0 %v854, 6
    %v856 = vpop.permute.xlu0 %855
    %vm857 = vcmask 64560
    %858 = vst.msk [vmem:[#allocation0] sm:$0x3] %vm857, %v856
    %s859 = scalar_lea.vmem [#allocation0], 6
    %860 = vst.msk [vmem:[%s859] sm:$0xc] %vm857, %v856
    %s861 = scalar_lea.vmem [#allocation0], 12
    %862 = vst.msk [vmem:[%s861] sm:$0x30] %vm857, %v856
    %s863 = scalar_lea.vmem [#allocation0], 18
    %864 = vst.msk [vmem:[%s863] sm:$0xc0] %vm857, %v856
    %s865 = scalar_lea.vmem %s0, 131
    %s866 = smov 3
    %v867 = vld [vmem:[%s865] ss:$16 sm:%s866]
    %s868 = scalar_lea.vmem %s0, 131
    %s869 = smov 12
    %v870 = vld [vmem:[%s868] ss:$16 sm:%s869]
    %vm871 = vcmask 1043458
    %v872 = vsel %vm871, %v870, %v867
    %s873 = scalar_lea.vmem %s0, 131
    %s874 = smov 48
    %v875 = vld [vmem:[%s873] ss:$16 sm:%s874]
    %vm876 = vcmask 1045508
    %v877 = vsel %vm876, %v875, %v872
    %s878 = scalar_lea.vmem %s0, 131
    %s879 = smov 192
    %v880 = vld [vmem:[%s878] ss:$16 sm:%s879]
    %vm881 = vcmask 1047558
    %v882 = vsel %vm881, %v880, %v877
    %883 = vrot.lane.b32.xlu0 %v882, 6
    %v884 = vpop.permute.xlu0 %883
    %vm885 = vcmask 64560
    %s886 = scalar_lea.vmem [#allocation0], 32
    %887 = vst.msk [vmem:[%s886] sm:$0x3] %vm885, %v884
    %s888 = scalar_lea.vmem [#allocation0], 38
    %889 = vst.msk [vmem:[%s888] sm:$0xc] %vm885, %v884
    %s890 = scalar_lea.vmem [#allocation0], 44
    %891 = vst.msk [vmem:[%s890] sm:$0x30] %vm885, %v884
    %s892 = scalar_lea.vmem [#allocation0], 50
    %893 = vst.msk [vmem:[%s892] sm:$0xc0] %vm885, %v884
    %s894 = scalar_lea.vmem %s0, 259
    %s895 = smov 3
    %v896 = vld [vmem:[%s894] ss:$16 sm:%s895]
    %897 = vrot.lane.b32.xlu0 %v896, 6
    %v898 = vpop.permute.xlu0 %897
    %vm899 = vcmask 64560
    %s900 = scalar_lea.vmem [#allocation0], 64
    %901 = vst.msk [vmem:[%s900] sm:$0x3] %vm899, %v898
    %s902 = scalar_lea.vmem %s0, 2
    %s903 = smov 3
    %v904 = vld [vmem:[%s902] ss:$16 sm:%s903]
    %s905 = scalar_lea.vmem %s0, 2
    %s906 = smov 12
    %v907 = vld [vmem:[%s905] ss:$16 sm:%s906]
    %vm908 = vcmask 1043458
    %v909 = vsel %vm908, %v907, %v904
    %s910 = scalar_lea.vmem %s0, 2
    %s911 = smov 48
    %v912 = vld [vmem:[%s910] ss:$16 sm:%s911]
    %vm913 = vcmask 1045508
    %v914 = vsel %vm913, %v912, %v909
    %s915 = scalar_lea.vmem %s0, 2
    %s916 = smov 192
    %v917 = vld [vmem:[%s915] ss:$16 sm:%s916]
    %vm918 = vcmask 1047558
    %v919 = vsel %vm918, %v917, %v914
    %920 = vrot.lane.b32.xlu0 %v919, 4
    %v921 = vpop.permute.xlu0 %920
    %vm922 = vcmask 48160
    %923 = vst.msk [vmem:[#allocation0] sm:$0x3] %vm922, %v921
    %s924 = scalar_lea.vmem [#allocation0], 6
    %925 = vst.msk [vmem:[%s924] sm:$0xc] %vm922, %v921
    %s926 = scalar_lea.vmem [#allocation0], 12
    %927 = vst.msk [vmem:[%s926] sm:$0x30] %vm922, %v921
    %s928 = scalar_lea.vmem [#allocation0], 18
    %929 = vst.msk [vmem:[%s928] sm:$0xc0] %vm922, %v921
    %s930 = scalar_lea.vmem %s0, 130
    %s931 = smov 3
    %v932 = vld [vmem:[%s930] ss:$16 sm:%s931]
    %s933 = scalar_lea.vmem %s0, 130
    %s934 = smov 12
    %v935 = vld [vmem:[%s933] ss:$16 sm:%s934]
    %vm936 = vcmask 1043458
    %v937 = vsel %vm936, %v935, %v932
    %s938 = scalar_lea.vmem %s0, 130
    %s939 = smov 48
    %v940 = vld [vmem:[%s938] ss:$16 sm:%s939]
    %vm941 = vcmask 1045508
    %v942 = vsel %vm941, %v940, %v937
    %s943 = scalar_lea.vmem %s0, 130
    %s944 = smov 192
    %v945 = vld [vmem:[%s943] ss:$16 sm:%s944]
    %vm946 = vcmask 1047558
    %v947 = vsel %vm946, %v945, %v942
    %948 = vrot.lane.b32.xlu0 %v947, 4
    %v949 = vpop.permute.xlu0 %948
    %vm950 = vcmask 48160
    %s951 = scalar_lea.vmem [#allocation0], 32
    %952 = vst.msk [vmem:[%s951] sm:$0x3] %vm950, %v949
    %s953 = scalar_lea.vmem [#allocation0], 38
    %954 = vst.msk [vmem:[%s953] sm:$0xc] %vm950, %v949
    %s955 = scalar_lea.vmem [#allocation0], 44
    %956 = vst.msk [vmem:[%s955] sm:$0x30] %vm950, %v949
    %s957 = scalar_lea.vmem [#allocation0], 50
    %958 = vst.msk [vmem:[%s957] sm:$0xc0] %vm950, %v949
    %s959 = scalar_lea.vmem %s0, 258
    %s960 = smov 3
    %v961 = vld [vmem:[%s959] ss:$16 sm:%s960]
    %962 = vrot.lane.b32.xlu0 %v961, 4
    %v963 = vpop.permute.xlu0 %962
    %vm964 = vcmask 48160
    %s965 = scalar_lea.vmem [#allocation0], 64
    %966 = vst.msk [vmem:[%s965] sm:$0x3] %vm964, %v963
    %s967 = scalar_lea.vmem %s0, 1
    %s968 = smov 3
    %v969 = vld [vmem:[%s967] ss:$16 sm:%s968]
    %s970 = scalar_lea.vmem %s0, 1
    %s971 = smov 12
    %v972 = vld [vmem:[%s970] ss:$16 sm:%s971]
    %vm973 = vcmask 1043458
    %v974 = vsel %vm973, %v972, %v969
    %s975 = scalar_lea.vmem %s0, 1
    %s976 = smov 48
    %v977 = vld [vmem:[%s975] ss:$16 sm:%s976]
    %vm978 = vcmask 1045508
    %v979 = vsel %vm978, %v977, %v974
    %s980 = scalar_lea.vmem %s0, 1
    %s981 = smov 192
    %v982 = vld [vmem:[%s980] ss:$16 sm:%s981]
    %vm983 = vcmask 1047558
    %v984 = vsel %vm983, %v982, %v979
    %985 = vrot.lane.b32.xlu0 %v984, 2
    %v986 = vpop.permute.xlu0 %985
    %vm987 = vcmask 31760
    %988 = vst.msk [vmem:[#allocation0] sm:$0x3] %vm987, %v986
    %s989 = scalar_lea.vmem [#allocation0], 6
    %990 = vst.msk [vmem:[%s989] sm:$0xc] %vm987, %v986
    %s991 = scalar_lea.vmem [#allocation0], 12
    %992 = vst.msk [vmem:[%s991] sm:$0x30] %vm987, %v986
    %s993 = scalar_lea.vmem [#allocation0], 18
    %994 = vst.msk [vmem:[%s993] sm:$0xc0] %vm987, %v986
    %s995 = scalar_lea.vmem %s0, 129
    %s996 = smov 3
    %v997 = vld [vmem:[%s995] ss:$16 sm:%s996]
    %s998 = scalar_lea.vmem %s0, 129
    %s999 = smov 12
    %v1000 = vld [vmem:[%s998] ss:$16 sm:%s999]
    %vm1001 = vcmask 1043458
    %v1002 = vsel %vm1001, %v1000, %v997
    %s1003 = scalar_lea.vmem %s0, 129
    %s1004 = smov 48
    %v1005 = vld [vmem:[%s1003] ss:$16 sm:%s1004]
    %vm1006 = vcmask 1045508
    %v1007 = vsel %vm1006, %v1005, %v1002
    %s1008 = scalar_lea.vmem %s0, 129
    %s1009 = smov 192
    %v1010 = vld [vmem:[%s1008] ss:$16 sm:%s1009]
    %vm1011 = vcmask 1047558
    %v1012 = vsel %vm1011, %v1010, %v1007
    %1013 = vrot.lane.b32.xlu0 %v1012, 2
    %v1014 = vpop.permute.xlu0 %1013
    %vm1015 = vcmask 31760
    %s1016 = scalar_lea.vmem [#allocation0], 32
    %1017 = vst.msk [vmem:[%s1016] sm:$0x3] %vm1015, %v1014
    %s1018 = scalar_lea.vmem [#allocation0], 38
    %1019 = vst.msk [vmem:[%s1018] sm:$0xc] %vm1015, %v1014
    %s1020 = scalar_lea.vmem [#allocation0], 44
    %1021 = vst.msk [vmem:[%s1020] sm:$0x30] %vm1015, %v1014
    %s1022 = scalar_lea.vmem [#allocation0], 50
    %1023 = vst.msk [vmem:[%s1022] sm:$0xc0] %vm1015, %v1014
    %s1024 = scalar_lea.vmem %s0, 257
    %s1025 = smov 3
    %v1026 = vld [vmem:[%s1024] ss:$16 sm:%s1025]
    %1027 = vrot.lane.b32.xlu0 %v1026, 2
    %v1028 = vpop.permute.xlu0 %1027
    %vm1029 = vcmask 31760
    %s1030 = scalar_lea.vmem [#allocation0], 64
    %1031 = vst.msk [vmem:[%s1030] sm:$0x3] %vm1029, %v1028
    %s1033 = sshllo.u32 0, 2
    %v1035 = vld [vmem:[#allocation0] sm:%s1033]
    %s1036 = sshllo.u32 0, 2
    %1037 = vst [vmem:[%s1] sm:%s1036] %v1035
    %s1038 = scalar_lea.vmem [#allocation0], 8
    %v1039 = vld [vmem:[%s1038] sm:%s1033]
    %s1040 = sshllo.u32 0, 2
    %s1041 = scalar_lea.vmem %s1, 2
    %1042 = vst [vmem:[%s1041] sm:%s1040] %v1039
    %s1043 = scalar_lea.vmem [#allocation0], 16
    %v1044 = vld [vmem:[%s1043] sm:%s1033]
    %s1045 = sshllo.u32 0, 2
    %s1046 = smul.addr 2, 2
    %s1047 = scalar_lea.vmem %s1, %s1046
    %1048 = vst [vmem:[%s1047] sm:%s1045] %v1044
    %s1049 = scalar_lea.vmem [#allocation0], 24
    %v1050 = vld [vmem:[%s1049] sm:%s1033]
    %s1051 = sshllo.u32 0, 2
    %s1052 = smul.addr 2, 3
    %s1053 = scalar_lea.vmem %s1, %s1052
    %1054 = vst [vmem:[%s1053] sm:%s1051] %v1050
    %s1055 = scalar_lea.vmem [#allocation0], 32
    %v1056 = vld [vmem:[%s1055] sm:%s1033]
    %s1057 = sshllo.u32 0, 2
    %s1058 = smul.addr 2, 4
    %s1059 = scalar_lea.vmem %s1, %s1058
    %1060 = vst [vmem:[%s1059] sm:%s1057] %v1056
    %s1061 = scalar_lea.vmem [#allocation0], 40
    %v1062 = vld [vmem:[%s1061] sm:%s1033]
    %s1063 = sshllo.u32 0, 2
    %s1064 = smul.addr 2, 5
    %s1065 = scalar_lea.vmem %s1, %s1064
    %1066 = vst [vmem:[%s1065] sm:%s1063] %v1062
    %s1067 = scalar_lea.vmem [#allocation0], 48
    %v1068 = vld [vmem:[%s1067] sm:%s1033]
    %s1069 = sshllo.u32 0, 2
    %s1070 = smul.addr 2, 6
    %s1071 = scalar_lea.vmem %s1, %s1070
    %1072 = vst [vmem:[%s1071] sm:%s1069] %v1068
    %s1073 = scalar_lea.vmem [#allocation0], 56
    %v1074 = vld [vmem:[%s1073] sm:%s1033]
    %s1075 = sshllo.u32 0, 2
    %s1076 = smul.addr 2, 7
    %s1077 = scalar_lea.vmem %s1, %s1076
    %1078 = vst [vmem:[%s1077] sm:%s1075] %v1074
    %s1079 = scalar_lea.vmem [#allocation0], 64
    %v1080 = vld [vmem:[%s1079] sm:%s1033]
    %s1081 = sshllo.u32 0, 2
    %s1082 = smul.addr 2, 8
    %s1083 = scalar_lea.vmem %s1, %s1082
    %1084 = vst [vmem:[%s1083] sm:%s1081] %v1080

// kernel: conv_transpose_upsample.1
$region0: #{conv_transpose_upsample.1}
  #allocation0 [shape = 'u32[]', space=smem, size = 0x4, offset = 0x4, fixed_abs, tag = 'smem constant byte address 0x4 - core index']
  #allocation1 [shape = 'u32[144,128]{1,0:T(1,128)}', space=vmem, size = 0x12000, scoped, tag = 'internal scratch']
  %s0 = inlined_call_operand.vmem [shape: f32[2,3,16,16], index: 0, kind: input, shape index: {}]
  %s1 = inlined_call_operand.vmem [shape: f32[16,64], index: 1, kind: input, shape index: {}]
  %s2 = inlined_call_operand.vmem [shape: f32[9,64], index: 2, kind: input, shape index: {}]
  %s3 = inlined_call_operand.vmem [shape: f32[3,64], index: 3, kind: input, shape index: {}]
  %s4 = inlined_call_operand.vmem [shape: f32[2,3,16,64], index: 4, kind: output, shape index: {}]
  %s5 = sld [smem:[#allocation0]]
  $region49: #{conv_transpose_upsample.1} parent=0
    _
  %s7 = ssub.s32 1, %s5
  %s8 = scalar_select 0, %s7, %s5
  loop: start=0, step=1, limit=4
  $region2: #{conv_transpose_upsample.1} parent=0 // loop_pre_header
    _
  $region3: #{conv_transpose_upsample.1} parent=0 // loop_header
    %s10 = sphi 0, %s14
    %p11 = scmp.ge.s32.totalorder %s10, 4
    %s17 = sphi 0, %s29
    %s18 = sphi 0, %s25
    %s19 = sphi 0, %s17
    %s20 = sphi 0, %s18
    %s21 = sphi 0, %s19
    %s22 = sphi 0, %s20
    %s34 = sphi 0, %s36
    %s37 = sphi 0, %s34
    %s38 = sphi 0, %s37
    %s54 = sphi 0, %s38
    %s58 = sphi 0, %s58
    %s60 = sphi 0, %s58
    %s61 = sphi 0, %s60
    %s75 = sphi 0, %s61
    %s79 = sphi 0, %s79
    %s81 = sphi 0, %s79
    %s82 = sphi 0, %s81
    %s96 = sphi 0, %s82
    %s100 = sphi 0, %s100
    %s102 = sphi 0, %s100
    %s103 = sphi 0, %s102
    %s117 = sphi 0, %s103
    %s125 = sphi 0, %s127
    %s128 = sphi 0, %s125
    %s129 = sphi 0, %s128
    %s145 = sphi 0, %s129
  $region4: #{conv_transpose_upsample.1} parent=0 // loop_header_branch
    %13 = sbr.rel (%p11) target = $region8
  $region5: #{conv_transpose_upsample.1} parent=0 // loop_body
    %s15 = ssub.s32 %s10, 1
    %s16 = ssub.s32 %s10, 2
    %s23 = sadd.s32 1, %s18
    %p24 = scmp.ge.s32.totalorder %s23, 1
    %s25 = scalar_select %p24, 0, %s23
    %s26 = sadd.s32 1, %s17
    %s27 = scalar_select %p24, %s26, %s17
    %p28 = scmp.ge.s32.totalorder %s27, 2
    %s29 = scalar_select %p28, 0, %s27
    %s30 = ssub.s32 %s17, %s29
    %s31 = ssub.s32 %s18, %s25
    %s32 = sor.u32 %s30, %s31
    %p33 = scmp.eq.s32.totalorder %s32, 0
    %s35 = sadd.s32 %s34, 1
    %s36 = scalar_select %p33, %s34, %s35
    %p39 = pneg %p33
    %p40 = scmp.eq.s32.totalorder %s10, 1
    %p41 = por %p39, %p40
    %p42 = scmp.ne.s32.totalorder %s34, %s37
    %p43 = scmp.eq.s32.totalorder %s10, 0
    %p44 = por %p42, %p43
    %p45 = scmp.ne.s32.totalorder %s34, %s37
    %p46 = scmp.eq.s32.totalorder %s15, 1
    %p47 = por %p45, %p46
    %p48 = scmp.ne.s32.totalorder %s37, %s38
    %p49 = scmp.eq.s32.totalorder %s15, 0
    %p50 = por %p48, %p49
    %p51 = scmp.ne.s32.totalorder %s37, %s38
    %p52 = scmp.eq.s32.totalorder %s16, 1
    %p53 = por %p51, %p52
    %p55 = scmp.ne.s32.totalorder %s38, %s54
    %p56 = scmp.eq.s32.totalorder %s16, 0
    %p57 = por %p55, %p56
    %s59 = sadd.s32 %s58, 1
    %p62 = scmp.eq.s32.totalorder %s10, 1
    %p63 = scmp.ne.s32.totalorder %s58, %s60
    %p64 = scmp.eq.s32.totalorder %s10, 0
    %p65 = por %p63, %p64
    %p66 = scmp.ne.s32.totalorder %s58, %s60
    %p67 = scmp.eq.s32.totalorder %s15, 1
    %p68 = por %p66, %p67
    %p69 = scmp.ne.s32.totalorder %s60, %s61
    %p70 = scmp.eq.s32.totalorder %s15, 0
    %p71 = por %p69, %p70
    %p72 = scmp.ne.s32.totalorder %s60, %s61
    %p73 = scmp.eq.s32.totalorder %s16, 1
    %p74 = por %p72, %p73
    %p76 = scmp.ne.s32.totalorder %s61, %s75
    %p77 = scmp.eq.s32.totalorder %s16, 0
    %p78 = por %p76, %p77
    %s80 = sadd.s32 %s79, 1
    %p83 = scmp.eq.s32.totalorder %s10, 1
    %p84 = scmp.ne.s32.totalorder %s79, %s81
    %p85 = scmp.eq.s32.totalorder %s10, 0
    %p86 = por %p84, %p85
    %p87 = scmp.ne.s32.totalorder %s79, %s81
    %p88 = scmp.eq.s32.totalorder %s15, 1
    %p89 = por %p87, %p88
    %p90 = scmp.ne.s32.totalorder %s81, %s82
    %p91 = scmp.eq.s32.totalorder %s15, 0
    %p92 = por %p90, %p91
    %p93 = scmp.ne.s32.totalorder %s81, %s82
    %p94 = scmp.eq.s32.totalorder %s16, 1
    %p95 = por %p93, %p94
    %p97 = scmp.ne.s32.totalorder %s82, %s96
    %p98 = scmp.eq.s32.totalorder %s16, 0
    %p99 = por %p97, %p98
    %s101 = sadd.s32 %s100, 1
    %p104 = scmp.eq.s32.totalorder %s10, 1
    %p105 = scmp.ne.s32.totalorder %s100, %s102
    %p106 = scmp.eq.s32.totalorder %s10, 0
    %p107 = por %p105, %p106
    %p108 = scmp.ne.s32.totalorder %s100, %s102
    %p109 = scmp.eq.s32.totalorder %s15, 1
    %p110 = por %p108, %p109
    %p111 = scmp.ne.s32.totalorder %s102, %s103
    %p112 = scmp.eq.s32.totalorder %s15, 0
    %p113 = por %p111, %p112
    %p114 = scmp.ne.s32.totalorder %s102, %s103
    %p115 = scmp.eq.s32.totalorder %s16, 1
    %p116 = por %p114, %p115
    %p118 = scmp.ne.s32.totalorder %s103, %s117
    %p119 = scmp.eq.s32.totalorder %s16, 0
    %p120 = por %p118, %p119
    %s121 = ssub.s32 %s17, %s29
    %s122 = ssub.s32 %s18, %s25
    %s123 = sor.u32 %s121, %s122
    %p124 = scmp.eq.s32.totalorder %s123, 0
    %s126 = sadd.s32 %s125, 1
    %s127 = scalar_select %p124, %s125, %s126
    %p130 = pneg %p124
    %p131 = scmp.eq.s32.totalorder %s10, 1
    %p132 = por %p130, %p131
    %p133 = scmp.ne.s32.totalorder %s125, %s128
    %p134 = scmp.eq.s32.totalorder %s10, 0
    %p135 = por %p133, %p134
    %p136 = scmp.ne.s32.totalorder %s125, %s128
    %p137 = scmp.eq.s32.totalorder %s15, 1
    %p138 = por %p136, %p137
    %p139 = scmp.ne.s32.totalorder %s128, %s129
    %p140 = scmp.eq.s32.totalorder %s15, 0
    %p141 = por %p139, %p140
    %p142 = scmp.ne.s32.totalorder %s128, %s129
    %p143 = scmp.eq.s32.totalorder %s16, 1
    %p144 = por %p142, %p143
    %p146 = scmp.ne.s32.totalorder %s129, %s145
    %p147 = scmp.eq.s32.totalorder %s16, 0
    %p148 = por %p146, %p147
    %p149 = scmp.le.s32.totalorder 1, %s10
    %p150 = scmp.lt.s32.totalorder %s10, 3
    %p151 = pnand %p149, %p150
    %p152 = pneg %p151
    // Predicated region
    $region9: #{conv_transpose_upsample.1} parent=5 // pred_check
      _
    $region10: #{conv_transpose_upsample.1} parent=5 // pred_check_branch
      %154 = sbr.rel (%p151) target = $region12
    $region11: #{conv_transpose_upsample.1} parent=5 // pred_region
      %s155 = ssub.s32 %s10, 1
      // Predicated region
      $region13: #{conv_transpose_upsample.1} parent=11 // pred_check
        %p156 = pneg %p71
      $region14: #{conv_transpose_upsample.1} parent=11 // pred_check_branch
        %158 = sbr.rel (%p156) target = $region16
      $region15: #{conv_transpose_upsample.1} parent=11 // pred_region
        _
      $region16: #{conv_transpose_upsample.1} parent=11 // pred_fallthru
        _
      // Predicated region
      $region17: #{conv_transpose_upsample.1} parent=11 // pred_check
        %p159 = pneg %p92
      $region18: #{conv_transpose_upsample.1} parent=11 // pred_check_branch
        %161 = sbr.rel (%p159) target = $region20
      $region19: #{conv_transpose_upsample.1} parent=11 // pred_region
        _
      $region20: #{conv_transpose_upsample.1} parent=11 // pred_fallthru
        _
      // Predicated region
      $region21: #{conv_transpose_upsample.1} parent=11 // pred_check
        %p162 = pneg %p113
      $region22: #{conv_transpose_upsample.1} parent=11 // pred_check_branch
        %164 = sbr.rel (%p162) target = $region24
      $region23: #{conv_transpose_upsample.1} parent=11 // pred_region
        _
      $region24: #{conv_transpose_upsample.1} parent=11 // pred_fallthru
        _
    $region12: #{conv_transpose_upsample.1} parent=5 // pred_fallthru
      _
    %p165 = scmp.lt.s32.totalorder %s10, 2
    // Predicated region
    $region25: #{conv_transpose_upsample.1} parent=5 // pred_check
      %p166 = pneg %p165
    $region26: #{conv_transpose_upsample.1} parent=5 // pred_check_branch
      %168 = sbr.rel (%p166) target = $region28
    $region27: #{conv_transpose_upsample.1} parent=5 // pred_region
      // Predicated region
      $region29: #{conv_transpose_upsample.1} parent=27 // pred_check
        %p169 = pneg %p44
      $region30: #{conv_transpose_upsample.1} parent=27 // pred_check_branch
        %171 = sbr.rel (%p169) target = $region32
      $region31: #{conv_transpose_upsample.1} parent=27 // pred_region
        %s172 = smul.u32 2, %s18
        %p173 = scmp.lt.s32.totalorder %s17, 1
        %s174 = scalar_select %p173, %s17, 1
        %p175 = scmp.lt.s32.totalorder %s172, 1
        %s176 = scalar_select %p175, %s172, 1
        %s177 = smul.addr %s174, 6
        %s178 = sadd.s32 %s176, %s177
        %s179 = smul.addr %s178, 8
        %s180 = scalar_lea.vmem %s0, %s179
        %s181 = smul.u32 2, %s18
      $region32: #{conv_transpose_upsample.1} parent=27 // pred_fallthru
        _
    $region28: #{conv_transpose_upsample.1} parent=5 // pred_fallthru
      _
    %p182 = scmp.le.s32.totalorder 1, %s10
    %p183 = scmp.lt.s32.totalorder %s10, 3
    %p184 = pnand %p182, %p183
    %p185 = pneg %p184
    // Predicated region
    $region33: #{conv_transpose_upsample.1} parent=5 // pred_check
      _
    $region34: #{conv_transpose_upsample.1} parent=5 // pred_check_branch
      %187 = sbr.rel (%p184) target = $region36
    $region35: #{conv_transpose_upsample.1} parent=5 // pred_region
      %s188 = ssub.s32 %s10, 1
      %s189 = smul.u32 2, %s20
      %p190 = scmp.lt.s32.totalorder %s19, 1
      %s191 = scalar_select %p190, %s19, 1
      %p192 = scmp.lt.s32.totalorder %s189, 1
      %s193 = scalar_select %p192, %s189, 1
      %s194 = smul.addr %s191, 6
      %s195 = sadd.s32 %s193, %s194
      %s196 = smul.addr %s195, 8
      %s197 = scalar_lea.vmem %s0, %s196
      %p198 = pneg %p50
      %p199 = pneg %p47
      %p200 = pneg %p71
      %p201 = pneg %p68
      %p202 = pneg %p92
      %p203 = pneg %p89
      %p204 = pneg %p113
      %p205 = pneg %p110
      %p206 = pneg %p141
      %p207 = pneg %p138
      %s208 = smul.u32 2, %s20
      %p209 = scmp.lt.s32.totalorder %s19, 1
      %s210 = scalar_select %p209, %s19, 1
      %p211 = scmp.lt.s32.totalorder %s208, 1
      %s212 = scalar_select %p211, %s208, 1
      %s213 = smul.addr %s210, 6
      %s214 = sadd.s32 %s212, %s213
      %s215 = smul.addr %s214, 8
      %s216 = scalar_lea.vmem %s4, %s215
      %s217 = smul.u32 2, %s20
      %p218 = scmp.lt.s32.totalorder %s19, 1
      %s219 = scalar_select %p218, %s19, 1
      %p220 = scmp.lt.s32.totalorder %s217, 1
      %s221 = scalar_select %p220, %s217, 1
      %s222 = smul.addr %s219, 6
      %s223 = sadd.s32 %s221, %s222
      %s224 = smul.addr %s223, 8
      %s225 = scalar_lea.vmem %s0, %s224
      %s226 = smul.u32 2, %s20
      %s227 = smul.u32 2, %s20
      %p228 = scmp.lt.s32.totalorder %s19, 1
      %s229 = scalar_select %p228, %s19, 1
      %p230 = scmp.lt.s32.totalorder %s227, 1
      %s231 = scalar_select %p230, %s227, 1
      %s232 = smul.addr %s229, 6
      %s233 = sadd.s32 %s231, %s232
      %s234 = smul.addr %s233, 8
      %s235 = scalar_lea.vmem %s4, %s234
      %s236 = smul.u32 2, %s20
      %v237 = vld [vmem:[%s1] sm:$0xff]
      %v238 = vld [vmem:[%s1 + $0x8] sm:$0xff]
      %v239 = vld [vmem:[%s225] sm:$0xff]
      %v240 = vld [vmem:[%s225 + $0x8] sm:$0xff]
      %vm241 = vcmask 130048
      %v243 = vsel %vm241, %v239, 0
      %v246 = vsel %vm241, %v240, 0
      %248 = vmatprep.subr.mxu0 0.0
      %249 = vmatpush1.msra.mxu0 %v237
      %250 = vmatprep.subr.mxu0 0.0
      %251 = vmatpush1.msra.mxu0 %v238
      %252 = vmatprep.subr.mxu0 0.0
      %253 = vmatpush1.msra.mxu0 0.0
      %254 = vmatprep.subr.mxu0 0.0
      %255 = vmatpush1.msra.mxu0 0.0
      %256 = vmatprep.subr.mxu0 0.0
      %257 = vmatpush1.msra.mxu0 0.0
      %258 = vmatprep.subr.mxu0 0.0
      %259 = vmatpush1.msra.mxu0 0.0
      %260 = vmatprep.subr.mxu0 0.0
      %261 = vmatpush1.msra.mxu0 0.0
      %262 = vmatprep.subr.mxu0 0.0
      %263 = vmatpush1.msra.mxu0 0.0
      %264 = vmatprep.subr.mxu0 0.0
      %265 = vmatpush1.msra.mxu0 0.0
      %266 = vmatprep.subr.mxu0 0.0
      %267 = vmatpush1.msra.mxu0 0.0
      %268 = vmatprep.subr.mxu0 0.0
      %269 = vmatpush1.msra.mxu0 0.0
      %270 = vmatprep.subr.mxu0 0.0
      %271 = vmatpush1.msra.mxu0 0.0
      %272 = vmatprep.subr.mxu0 0.0
      %273 = vmatpush1.msra.mxu0 0.0
      %274 = vmatprep.subr.mxu0 0.0
      %275 = vmatpush1.msra.mxu0 0.0
      %276 = vmatprep.subr.mxu0 0.0
      %277 = vmatpush1.msra.mxu0 0.0
      %278 = vmatprep.subr.mxu0 0.0
      %279 = vmatpush1.msra.mxu0 0.0
      %280 = vmatprep.subr.mxu0 0.0
      %281 = vmatpush1.msra.mxu0 0.0
      %282 = vmatprep.subr.mxu0 0.0
      %283 = vmatpush1.msra.mxu0 0.0
      %284 = vmatprep.subr.mxu0 0.0
      %285 = vmatpush1.msra.mxu0 0.0
      %286 = vmatprep.subr.mxu0 0.0
      %287 = vmatpush1.msra.mxu0 0.0
      %288 = vmatprep.subr.mxu0 0.0
      %289 = vmatpush1.msra.mxu0 0.0
      %290 = vmatprep.subr.mxu0 0.0
      %291 = vmatpush1.msra.mxu0 0.0
      %292 = vmatprep.subr.mxu0 0.0
      %293 = vmatpush1.msra.mxu0 0.0
      %294 = vmatprep.subr.mxu0 0.0
      %295 = vmatpush1.msra.mxu0 0.0
      %296 = vmatprep.subr.mxu0 0.0
      %297 = vmatpush1.msra.mxu0 0.0
      %298 = vmatprep.subr.mxu0 0.0
      %299 = vmatpush1.msra.mxu0 0.0
      %300 = vmatprep.subr.mxu0 0.0
      %301 = vmatpush1.msra.mxu0 0.0
      %302 = vmatprep.subr.mxu0 0.0
      %303 = vmatpush1.msra.mxu0 0.0
      %304 = vmatprep.subr.mxu0 0.0
      %305 = vmatpush1.msra.mxu0 0.0
      %306 = vmatprep.subr.mxu0 0.0
      %307 = vmatpush1.msra.mxu0 0.0
      %308 = vmatprep.subr.mxu0 0.0
      %309 = vmatpush1.msra.mxu0 0.0
      %310 = vmatprep.subr.mxu0 0.0
      %311 = vmatpush1.msra.mxu0 0.0
      %312 = vmatprep.mubr.f32.mxu0 0.0
      %313 = vmatmul.mubr.f32.gmra.mrb[0].mxu0 %v243
      %v314 = vpop.f32.mrb[0].mxu0
      %v315 = vadd.f32 0.0, %v314
      %v316 = vpop.f32.mrb[0].mxu0
      %317 = vmatprep.mubr.f32.mxu0 0.0
      %318 = vmatmul.mubr.f32.gmra.mrb[0].mxu0 %v246
      %v319 = vpop.f32.mrb[0].mxu0
      %v320 = vadd.f32 0.0, %v319
      %v321 = vpop.f32.mrb[0].mxu0
      %322 = vdwg.mxu0
      %s323 = scalar_lea.vmem %s225, 16
      %v324 = vld [vmem:[%s323] sm:$0xff]
      %v325 = vld [vmem:[%s323 + $0x8] sm:$0xff]
      %v327 = vsel %vm241, %v324, 0
      %v330 = vsel %vm241, %v325, 0
      %332 = vmatprep.subr.mxu0 0.0
      %333 = vmatpush1.msra.mxu0 %v237
      %334 = vmatprep.subr.mxu0 0.0
      %335 = vmatpush1.msra.mxu0 %v238
      %336 = vmatprep.subr.mxu0 0.0
      %337 = vmatpush1.msra.mxu0 0.0
      %338 = vmatprep.subr.mxu0 0.0
      %339 = vmatpush1.msra.mxu0 0.0
      %340 = vmatprep.subr.mxu0 0.0
      %341 = vmatpush1.msra.mxu0 0.0
      %342 = vmatprep.subr.mxu0 0.0
      %343 = vmatpush1.msra.mxu0 0.0
      %344 = vmatprep.subr.mxu0 0.0
      %345 = vmatpush1.msra.mxu0 0.0
      %346 = vmatprep.subr.mxu0 0.0
      %347 = vmatpush1.msra.mxu0 0.0
      %348 = vmatprep.subr.mxu0 0.0
      %349 = vmatpush1.msra.mxu0 0.0
      %350 = vmatprep.subr.mxu0 0.0
      %351 = vmatpush1.msra.mxu0 0.0
      %352 = vmatprep.subr.mxu0 0.0
      %353 = vmatpush1.msra.mxu0 0.0
      %354 = vmatprep.subr.mxu0 0.0
      %355 = vmatpush1.msra.mxu0 0.0
      %356 = vmatprep.subr.mxu0 0.0
      %357 = vmatpush1.msra.mxu0 0.0
      %358 = vmatprep.subr.mxu0 0.0
      %359 = vmatpush1.msra.mxu0 0.0
      %360 = vmatprep.subr.mxu0 0.0
      %361 = vmatpush1.msra.mxu0 0.0
      %362 = vmatprep.subr.mxu0 0.0
      %363 = vmatpush1.msra.mxu0 0.0
      %364 = vmatprep.subr.mxu0 0.0
      %365 = vmatpush1.msra.mxu0 0.0
      %366 = vmatprep.subr.mxu0 0.0
      %367 = vmatpush1.msra.mxu0 0.0
      %368 = vmatprep.subr.mxu0 0.0
      %369 = vmatpush1.msra.mxu0 0.0
      %370 = vmatprep.subr.mxu0 0.0
      %371 = vmatpush1.msra.mxu0 0.0
      %372 = vmatprep.subr.mxu0 0.0
      %373 = vmatpush1.msra.mxu0 0.0
      %374 = vmatprep.subr.mxu0 0.0
      %375 = vmatpush1.msra.mxu0 0.0
      %376 = vmatprep.subr.mxu0 0.0
      %377 = vmatpush1.msra.mxu0 0.0
      %378 = vmatprep.subr.mxu0 0.0
      %379 = vmatpush1.msra.mxu0 0.0
      %380 = vmatprep.subr.mxu0 0.0
      %381 = vmatpush1.msra.mxu0 0.0
      %382 = vmatprep.subr.mxu0 0.0
      %383 = vmatpush1.msra.mxu0 0.0
      %384 = vmatprep.subr.mxu0 0.0
      %385 = vmatpush1.msra.mxu0 0.0
      %386 = vmatprep.subr.mxu0 0.0
      %387 = vmatpush1.msra.mxu0 0.0
      %388 = vmatprep.subr.mxu0 0.0
      %389 = vmatpush1.msra.mxu0 0.0
      %390 = vmatprep.subr.mxu0 0.0
      %391 = vmatpush1.msra.mxu0 0.0
      %392 = vmatprep.subr.mxu0 0.0
      %393 = vmatpush1.msra.mxu0 0.0
      %394 = vmatprep.subr.mxu0 0.0
      %395 = vmatpush1.msra.mxu0 0.0
      %396 = vmatprep.mubr.f32.mxu0 0.0
      %397 = vmatmul.mubr.f32.gmra.mrb[0].mxu0 %v327
      %v398 = vpop.f32.mrb[0].mxu0
      %v399 = vadd.f32 0.0, %v398
      %v400 = vpop.f32.mrb[0].mxu0
      %401 = vmatprep.mubr.f32.mxu0 0.0
      %402 = vmatmul.mubr.f32.gmra.mrb[0].mxu0 %v330
      %v403 = vpop.f32.mrb[0].mxu0
      %v404 = vadd.f32 0.0, %v403
      %v405 = vpop.f32.mrb[0].mxu0
      %406 = vdwg.mxu0
      %s407 = scalar_lea.vmem %s225, 32
      %v408 = vld [vmem:[%s407] sm:$0xff]
      %v409 = vld [vmem:[%s407 + $0x8] sm:$0xff]
      %v411 = vsel %vm241, %v408, 0
      %v414 = vsel %vm241, %v409, 0
      %416 = vmatprep.subr.mxu0 0.0
      %417 = vmatpush1.msra.mxu0 %v237
      %418 = vmatprep.subr.mxu0 0.0
      %419 = vmatpush1.msra.mxu0 %v238
      %420 = vmatprep.subr.mxu0 0.0
      %421 = vmatpush1.msra.mxu0 0.0
      %422 = vmatprep.subr.mxu0 0.0
      %423 = vmatpush1.msra.mxu0 0.0
      %424 = vmatprep.subr.mxu0 0.0
      %425 = vmatpush1.msra.mxu0 0.0
      %426 = vmatprep.subr.mxu0 0.0
      %427 = vmatpush1.msra.mxu0 0.0
      %428 = vmatprep.subr.mxu0 0.0
      %429 = vmatpush1.msra.mxu0 0.0
      %430 = vmatprep.subr.mxu0 0.0
      %431 = vmatpush1.msra.mxu0 0.0
      %432 = vmatprep.subr.mxu0 0.0
      %433 = vmatpush1.msra.mxu0 0.0
      %434 = vmatprep.subr.mxu0 0.0
      %435 = vmatpush1.msra.mxu0 0.0
      %436 = vmatprep.subr.mxu0 0.0
      %437 = vmatpush1.msra.mxu0 0.0
      %438 = vmatprep.subr.mxu0 0.0
      %439 = vmatpush1.msra.mxu0 0.0
      %440 = vmatprep.subr.mxu0 0.0
      %441 = vmatpush1.msra.mxu0 0.0
      %442 = vmatprep.subr.mxu0 0.0
      %443 = vmatpush1.msra.mxu0 0.0
      %444 = vmatprep.subr.mxu0 0.0
      %445 = vmatpush1.msra.mxu0 0.0
      %446 = vmatprep.subr.mxu0 0.0
      %447 = vmatpush1.msra.mxu0 0.0
      %448 = vmatprep.subr.mxu0 0.0
      %449 = vmatpush1.msra.mxu0 0.0
      %450 = vmatprep.subr.mxu0 0.0
      %451 = vmatpush1.msra.mxu0 0.0
      %452 = vmatprep.subr.mxu0 0.0
      %453 = vmatpush1.msra.mxu0 0.0
      %454 = vmatprep.subr.mxu0 0.0
      %455 = vmatpush1.msra.mxu0 0.0
      %456 = vmatprep.subr.mxu0 0.0
      %457 = vmatpush1.msra.mxu0 0.0
      %458 = vmatprep.subr.mxu0 0.0
      %459 = vmatpush1.msra.mxu0 0.0
      %460 = vmatprep.subr.mxu0 0.0
      %461 = vmatpush1.msra.mxu0 0.0
      %462 = vmatprep.subr.mxu0 0.0
      %463 = vmatpush1.msra.mxu0 0.0
      %464 = vmatprep.subr.mxu0 0.0
      %465 = vmatpush1.msra.mxu0 0.0
      %466 = vmatprep.subr.mxu0 0.0
      %467 = vmatpush1.msra.mxu0 0.0
      %468 = vmatprep.subr.mxu0 0.0
      %469 = vmatpush1.msra.mxu0 0.0
      %470 = vmatprep.subr.mxu0 0.0
      %471 = vmatpush1.msra.mxu0 0.0
      %472 = vmatprep.subr.mxu0 0.0
      %473 = vmatpush1.msra.mxu0 0.0
      %474 = vmatprep.subr.mxu0 0.0
      %475 = vmatpush1.msra.mxu0 0.0
      %476 = vmatprep.subr.mxu0 0.0
      %477 = vmatpush1.msra.mxu0 0.0
      %478 = vmatprep.subr.mxu0 0.0
      %479 = vmatpush1.msra.mxu0 0.0
      %480 = vmatprep.mubr.f32.mxu0 0.0
      %481 = vmatmul.mubr.f32.gmra.mrb[0].mxu0 %v411
      %v482 = vpop.f32.mrb[0].mxu0
      %v483 = vadd.f32 0.0, %v482
      %v484 = vpop.f32.mrb[0].mxu0
      %485 = vmatprep.mubr.f32.mxu0 0.0
      %486 = vmatmul.mubr.f32.gmra.mrb[0].mxu0 %v414
      %v487 = vpop.f32.mrb[0].mxu0
      %v488 = vadd.f32 0.0, %v487
      %v489 = vpop.f32.mrb[0].mxu0
      %490 = vdwg.mxu0
      %v491 = vld [vmem:[%s2] sm:$0x1]
      %v492 = vlaneseq
      %v493 = vshrl.u32 %v492, 7
      %v494 = vsub.s32 0, %v493
      %v495 = vrot.slane %v491, %v494
      %v496 = vmul.f32 %v315, %v495
      %v497 = vmul.f32 %v320, %v495
      %v498 = vld [vmem:[%s2 + $0x1] sm:$0x1]
      %v499 = vlaneseq
      %v500 = vshrl.u32 %v499, 7
      %v501 = vsub.s32 0, %v500
      %v502 = vrot.slane %v498, %v501
      %v503 = vmul.f32 %v399, %v502
      %v504 = vmul.f32 %v404, %v502
      %v505 = vadd.f32 %v496, %v503
      %v506 = vadd.f32 %v497, %v504
      %v507 = vld [vmem:[%s2 + $0x2] sm:$0x1]
      %v508 = vlaneseq
      %v509 = vshrl.u32 %v508, 7
      %v510 = vsub.s32 0, %v509
      %v511 = vrot.slane %v507, %v510
      %v512 = vmul.f32 %v483, %v511
      %v513 = vmul.f32 %v488, %v511
      %v514 = vadd.f32 %v505, %v512
      %v515 = vadd.f32 %v506, %v513
      %v516 = vld [vmem:[%s3] sm:$0x1]
      %v517 = vlaneseq
      %v518 = vshrl.u32 %v517, 7
      %v519 = vsub.s32 0, %v518
      %v520 = vrot.slane %v516, %v519
      %v521 = vadd.f32 %v514, %v520
      %v522 = vadd.f32 %v515, %v520
      %vm523 = vcmask 523264
      %524 = vst.msk [vmem:[%s235] sm:$0xff] %vm523, %v521
      %525 = vst.msk [vmem:[%s235 + $0x8] sm:$0xff] %vm523, %v522
      %v526 = vld [vmem:[%s2 + $0x3] sm:$0x1]
      %v527 = vlaneseq
      %v528 = vshrl.u32 %v527, 7
      %v529 = vsub.s32 0, %v528
      %v530 = vrot.slane %v526, %v529
      %v531 = vmul.f32 %v315, %v530
      %v532 = vmul.f32 %v320, %v530
      %v533 = vld [vmem:[%s2 + $0x4] sm:$0x1]
      %v534 = vlaneseq
      %v535 = vshrl.u32 %v534, 7
      %v536 = vsub.s32 0, %v535
      %v537 = vrot.slane %v533, %v536
      %v538 = vmul.f32 %v399, %v537
      %v539 = vmul.f32 %v404, %v537
      %v540 = vadd.f32 %v531, %v538
      %v541 = vadd.f32 %v532, %v539
      %v542 = vld [vmem:[%s2 + $0x5] sm:$0x1]
      %v543 = vlaneseq
      %v544 = vshrl.u32 %v543, 7
      %v545 = vsub.s32 0, %v544
      %v546 = vrot.slane %v542, %v545
      %v547 = vmul.f32 %v483, %v546
      %v548 = vmul.f32 %v488, %v546
      %v549 = vadd.f32 %v540, %v547
      %v550 = vadd.f32 %v541, %v548
      %v551 = vld [vmem:[%s3 + $0x1] sm:$0x1]
      %v552 = vlaneseq
      %v553 = vshrl.u32 %v552, 7
      %v554 = vsub.s32 0, %v553
      %v555 = vrot.slane %v551, %v554
      %v556 = vadd.f32 %v549, %v555
      %v557 = vadd.f32 %v550, %v555
      %s558 = scalar_lea.vmem %s235, 16
      %559 = vst.msk [vmem:[%s558] sm:$0xff] %vm523, %v556
      %560 = vst.msk [vmem:[%s558 + $0x8] sm:$0xff] %vm523, %v557
      %v561 = vld [vmem:[%s2 + $0x6] sm:$0x1]
      %v562 = vlaneseq
      %v563 = vshrl.u32 %v562, 7
      %v564 = vsub.s32 0, %v563
      %v565 = vrot.slane %v561, %v564
      %v566 = vmul.f32 %v315, %v565
      %v567 = vmul.f32 %v320, %v565
      %v568 = vld [vmem:[%s2 + $0x7] sm:$0x1]
      %v569 = vlaneseq
      %v570 = vshrl.u32 %v569, 7
      %v571 = vsub.s32 0, %v570
      %v572 = vrot.slane %v568, %v571
      %v573 = vmul.f32 %v399, %v572
      %v574 = vmul.f32 %v404, %v572
      %v575 = vadd.f32 %v566, %v573
      %v576 = vadd.f32 %v567, %v574
      %v577 = vld [vmem:[%s2 + $0x8] sm:$0x1]
      %v578 = vlaneseq
      %v579 = vshrl.u32 %v578, 7
      %v580 = vsub.s32 0, %v579
      %v581 = vrot.slane %v577, %v580
      %v582 = vmul.f32 %v483, %v581
      %v583 = vmul.f32 %v488, %v581
      %v584 = vadd.f32 %v575, %v582
      %v585 = vadd.f32 %v576, %v583
      %v586 = vld [vmem:[%s3 + $0x2] sm:$0x1]
      %v587 = vlaneseq
      %v588 = vshrl.u32 %v587, 7
      %v589 = vsub.s32 0, %v588
      %v590 = vrot.slane %v586, %v589
      %v591 = vadd.f32 %v584, %v590
      %v592 = vadd.f32 %v585, %v590
      %s593 = scalar_lea.vmem %s235, 32
      %594 = vst.msk [vmem:[%s593] sm:$0xff] %vm523, %v591
      %595 = vst.msk [vmem:[%s593 + $0x8] sm:$0xff] %vm523, %v592
      %s596 = smul.u32 2, %s20
      %p597 = scmp.lt.s32.totalorder %s19, 1
      %s598 = scalar_select %p597, %s19, 1
      %p599 = scmp.lt.s32.totalorder %s596, 1
      %s600 = scalar_select %p599, %s596, 1
      %s601 = smul.addr %s598, 6
      %s602 = sadd.s32 %s600, %s601
      %s603 = smul.addr %s602, 8
      %s604 = scalar_lea.vmem %s4, %s603
      // Predicated region
      $region37: #{conv_transpose_upsample.1} parent=35 // pred_check
        %p605 = pneg %p138
      $region38: #{conv_transpose_upsample.1} parent=35 // pred_check_branch
        %607 = sbr.rel (%p605) target = $region40
      $region39: #{conv_transpose_upsample.1} parent=35 // pred_region
        %s608 = smul.u32 2, %s20
      $region40: #{conv_transpose_upsample.1} parent=35 // pred_fallthru
        _
    $region36: #{conv_transpose_upsample.1} parent=5 // pred_fallthru
      _
    %p609 = scmp.le.s32.totalorder 2, %s10
    // Predicated region
    $region41: #{conv_transpose_upsample.1} parent=5 // pred_check
      %p610 = pneg %p609
    $region42: #{conv_transpose_upsample.1} parent=5 // pred_check_branch
      %612 = sbr.rel (%p610) target = $region44
    $region43: #{conv_transpose_upsample.1} parent=5 // pred_region
      %s613 = ssub.s32 %s10, 2
      // Predicated region
      $region45: #{conv_transpose_upsample.1} parent=43 // pred_check
        %p614 = pneg %p144
      $region46: #{conv_transpose_upsample.1} parent=43 // pred_check_branch
        %616 = sbr.rel (%p614) target = $region48
      $region47: #{conv_transpose_upsample.1} parent=43 // pred_region
        %s617 = smul.u32 2, %s22
        %p618 = scmp.lt.s32.totalorder %s21, 1
        %s619 = scalar_select %p618, %s21, 1
        %p620 = scmp.lt.s32.totalorder %s617, 1
        %s621 = scalar_select %p620, %s617, 1
        %s622 = smul.addr %s619, 6
        %s623 = sadd.s32 %s621, %s622
        %s624 = smul.addr %s623, 8
        %s625 = scalar_lea.vmem %s4, %s624
      $region48: #{conv_transpose_upsample.1} parent=43 // pred_fallthru
        _
    $region44: #{conv_transpose_upsample.1} parent=5 // pred_fallthru
      _
  $region6: #{conv_transpose_upsample.1} parent=0 // loop_footer
    %s14 = sadd.s32 1, %s10
  $region7: #{conv_transpose_upsample.1} parent=0 // loop_footer_branch
    %9 = sbr.rel target = $region3
  $region8: #{conv_transpose_upsample.1} parent=0 // loop_exit
    _

</llo_original>
